<compile_context>
chip_gen: v7x
topology: tpu7x:2x2x1
jax: 0.10.0
libtpu: 0.0.40
codegen_flags: <defaults>
</compile_context>

<pallas_src>
import jax
import jax.numpy as jnp
from jax.experimental import pallas as pl
from jax.experimental.pallas import tpu as pltpu


def _relate_kernel(all_obj_ref, ho_ref, spatial_ref, qb_ref,
                   w1s_ref, w2_ref, eye_ref,
                   related_ref, weights_ref):
    f32 = jnp.float32
    tb = spatial_ref.shape[0]          # relations handled by this grid step

    # Static unrolled loop over the TB relations in this block (TB is tiny).
    for b in range(tb):
        sp = spatial_ref[b]                                              # (N, 3)
        # Layer 1: the batch-invariant all_objects@W1o (ho) and the per-relation
        # query@W1q + b1 (qb) were precomputed in the wrapper; only the
        # per-(relation, object) spatial term runs here, on the MXU (K=3 -> pad).
        hs = jnp.dot(sp, w1s_ref[...], preferred_element_type=f32)       # (N, H)
        h = jnp.maximum(ho_ref[...] + hs + qb_ref[b], 0.0)               # (N, H)

        # Score head (H -> 1) on the MXU; b2 omitted (softmax shift-invariance).
        scores = jnp.dot(h, w2_ref[...], preferred_element_type=f32)     # (N, 1)

        # Softmax over objects (sublane axis); exact division (cheap, one vreg).
        m = jnp.max(scores, axis=0, keepdims=True)
        e = jnp.exp(scores - m)
        w_col = e / jnp.sum(e, axis=0, keepdims=True)                    # (N, 1)

        related_ref[b] = (w_col * all_obj_ref[...]).astype(related_ref.dtype)

        # Lane-dense (1, N) weights row: multiply against a precomputed identity
        # and sublane-reduce (replaces the old iota/where/reduce vreg hog;
        # avoids a minor-dim-1 transpose and an (N,1) masked-store layout).
        weights_ref[b] = jnp.sum(eye_ref[...] * w_col, axis=0, keepdims=True)


def init_params(key, d_obj, d_txt, hidden=128):
    """Deterministic synthetic parameters, matching nn.Linear shapes."""
    ks = jax.random.split(key, 8)

    def lin(kw, kb, fin, fout):
        bound = 1.0 / (float(fin) ** 0.5)
        w = jax.random.uniform(kw, (fout, fin), jnp.float32, -bound, bound)
        b = jax.random.uniform(kb, (fout,), jnp.float32, -bound, bound)
        return w, b

    wa, ba = lin(ks[0], ks[1], d_obj, d_obj)            # anchor_proj
    wr, br = lin(ks[2], ks[3], d_txt, d_obj)            # rel_text_proj
    w1, b1 = lin(ks[4], ks[5], 2 * d_obj + 3, hidden)   # score_mlp[0]
    w2, b2 = lin(ks[6], ks[7], hidden, 1)               # score_mlp[2]
    return dict(anchor_proj_w=wa, anchor_proj_b=ba,
                rel_text_proj_w=wr, rel_text_proj_b=br,
                score1_w=w1, score1_b=b1, score2_w=w2, score2_b=b2)


def relate_module_forward_batched(params, all_objects, anchor_feats, relation_text, coords):
    """Batched version: anchor_feats (B, M, D), relation_text (B, D_txt);
    all_objects (N, D) and coords (N, 3) shared by every relation."""
    B, M, D = anchor_feats.shape
    N = all_objects.shape[0]
    H = params["score1_w"].shape[0]
    f32 = jnp.float32

    # ---- wrapper precompute (plain XLA, done once per batch) -----------------
    w1 = params["score1_w"]                                  # (H, 2D+3)
    w1q_t = w1[:, :D].T                                      # (D, H)
    w1o_t = w1[:, D:2 * D].T                                 # (D, H)
    w1s_t = w1[:, 2 * D:].T                                  # (3, H)
    w2_col = params["score2_w"].reshape(H, 1)                # (H, 1)

    # Query path hoisted out of the kernel (was three M=1 matmuls per grid step).
    anchor_rep = jnp.mean(anchor_feats, axis=1)                                       # (B, D)
    anchor_vec = anchor_rep @ params["anchor_proj_w"].T + params["anchor_proj_b"]
    rel_vec = relation_text @ params["rel_text_proj_w"].T + params["rel_text_proj_b"]
    query = jnp.tanh(anchor_vec + rel_vec)                                            # (B, D)
    q_bias = (query @ w1q_t + params["score1_b"]).reshape(B, 1, H)                    # query@W1q + b1
    # NOTE: score_mlp[2].bias (b2) is intentionally dropped downstream:
    # softmax(scores + c) == softmax(scores), so neither output depends on it.

    # Batch-invariant main matmul hoisted out of the grid (was recomputed B times).
    ho = (all_objects @ w1o_t).astype(f32)                                            # (N, H)
    # TODO(synk): for extra MXU throughput on v6e/v7x, cast the operands of this
    # matmul (and the query path above) to bf16 with preferred_element_type=f32;
    # kept f32 here so the 1e-3 validation tolerance holds.

    # Glue: data-dependent coords[argmax(anchor_feats)] gather stays in XLA.
    # Like the reference PyTorch, the subtraction below broadcasts only if N == D.
    anchor_idx = jnp.argmax(anchor_feats, axis=1)              # (B, D)
    anchor_coord = jnp.take(coords, anchor_idx, axis=0)        # (B, D, 3)
    spatial = coords[None, :, :] - anchor_coord                # (B, N, 3)

    eye = jnp.eye(N, dtype=f32)                                # for the (1, N) weights row

    # TB relations per grid step; keep >=2 "parallel" blocks when B is even so
    # both v7x TensorCores get work.  (VMEM footprint is << the 64 MiB v7x cap.)
    num_blocks = 2 if (B % 2 == 0 and B >= 2) else 1
    tb = B // num_blocks

    def shared(arr):
        # Constant-index inputs: fetched once, never re-DMA'd across grid steps.
        # NOTE(perf-review): pipeline_mode=pl.Buffered(1) would drop the dead
        # second buffer; skipped here (saves <0.5 MiB at these sizes).
        nd = arr.ndim
        return pl.BlockSpec(arr.shape, lambda g, nd=nd: (0,) * nd)

    related, weights = pl.pallas_call(
        _relate_kernel,
        out_shape=(jax.ShapeDtypeStruct((B, N, D), f32),
                   jax.ShapeDtypeStruct((B, 1, N), f32)),
        grid=(num_blocks,),
        in_specs=[
            shared(all_objects),                               # (N, D)  fetched once
            shared(ho),                                        # (N, H)  fetched once
            pl.BlockSpec((tb, N, 3), lambda g: (g, 0, 0)),     # spatial block
            pl.BlockSpec((tb, 1, H), lambda g: (g, 0, 0)),     # q_bias block
            shared(w1s_t),                                     # (3, H)
            shared(w2_col),                                    # (H, 1)
            shared(eye),                                       # (N, N)
        ],
        out_specs=(pl.BlockSpec((tb, N, D), lambda g: (g, 0, 0)),
                   pl.BlockSpec((tb, 1, N), lambda g: (g, 0, 0))),
        compiler_params=pltpu.CompilerParams(
            dimension_semantics=("parallel",)),
    )(all_objects, ho, spatial, q_bias, w1s_t, w2_col, eye)

    return related, weights[:, 0, :]


def relate_module_forward(params, all_objects, anchor_feats, relation_text, coords):
    """Single relation (exact module signature); thin wrapper over the batched kernel."""
    related, weights = relate_module_forward_batched(
        params, all_objects, anchor_feats[None], relation_text[None], coords)
    return related[0], weights[0]


def reference(params, all_objects, anchor_feats, relation_text, coords):
    """Pure-JAX mirror of the PyTorch forward, for validation."""
    anchor_rep = anchor_feats.mean(axis=0)
    anchor_vec = anchor_rep @ params["anchor_proj_w"].T + params["anchor_proj_b"]
    rel_vec = relation_text @ params["rel_text_proj_w"].T + params["rel_text_proj_b"]
    query = jnp.tanh(anchor_vec + rel_vec)
    anchor_coord = coords[jnp.argmax(anchor_feats, axis=0)]
    spatial = coords - anchor_coord
    qe = jnp.broadcast_to(query[None, :], (all_objects.shape[0], query.shape[0]))
    combined = jnp.concatenate([qe, all_objects, spatial], axis=1)
    h = jnp.maximum(combined @ params["score1_w"].T + params["score1_b"], 0.0)
    scores = (h @ params["score2_w"].T + params["score2_b"])[:, 0]
    w = jax.nn.softmax(scores, axis=0)
    return w[:, None] * all_objects, w


if __name__ == "__main__":
    # N_OBJ == D_OBJ is required by the reference's coords - anchor_coord broadcast;
    # 128 also keeps both kernel outputs lane-dense (last dim a multiple of 128).
    N_OBJ = D_OBJ = 128
    M, D_TXT, B = 4, 64, 4

    key = jax.random.PRNGKey(0)
    k_in, k_par = jax.random.split(key)
    k1, k2, k3, k4 = jax.random.split(k_in, 4)
    all_objects = jax.random.normal(k1, (N_OBJ, D_OBJ), jnp.float32)
    anchor_feats = jax.random.normal(k2, (B, M, D_OBJ), jnp.float32)
    relation_text = jax.random.normal(k3, (B, D_TXT), jnp.float32)
    coords = jax.random.normal(k4, (N_OBJ, 3), jnp.float32)

    params = init_params(k_par, D_OBJ, D_TXT)

    # batched kernel (grid over relation blocks)
    related, weights = relate_module_forward_batched(
        params, all_objects, anchor_feats, relation_text, coords)
    jax.block_until_ready((related, weights))
    assert related.shape == (B, N_OBJ, D_OBJ) and weights.shape == (B, N_OBJ)

    ref_rel = jnp.stack([reference(params, all_objects, anchor_feats[b],
                                   relation_text[b], coords)[0] for b in range(B)])
    ref_w = jnp.stack([reference(params, all_objects, anchor_feats[b],
                                 relation_text[b], coords)[1] for b in range(B)])
    assert jnp.allclose(related, ref_rel, rtol=1e-3, atol=1e-3)
    assert jnp.allclose(weights, ref_w, rtol=1e-3, atol=1e-3)

    # single-relation path (exact module signature)
    r1, w1 = relate_module_forward(params, all_objects, anchor_feats[0],
                                   relation_text[0], coords)
    jax.block_until_ready((r1, w1))
    assert r1.shape == (N_OBJ, D_OBJ) and w1.shape == (N_OBJ,)
    assert jnp.allclose(r1, ref_rel[0], rtol=1e-3, atol=1e-3)
    assert jnp.allclose(w1, ref_w[0], rtol=1e-3, atol=1e-3)

    print("KERNEL_OK")
</pallas_src>

<mosaic_0001>
module attributes {stable_mosaic.version = 11 : i64} {
  func.func @_relate_kernel(%arg0: i32, %arg1: memref<128x128xf32, #tpu.memory_space<vmem>>, %arg2: memref<128x128xf32, #tpu.memory_space<vmem>>, %arg3: memref<2x128x3xf32, #tpu.memory_space<vmem>>, %arg4: memref<2x1x128xf32, #tpu.memory_space<vmem>>, %arg5: memref<3x128xf32, #tpu.memory_space<vmem>>, %arg6: memref<128x1xf32, #tpu.memory_space<vmem>>, %arg7: memref<128x128xf32, #tpu.memory_space<vmem>>, %arg8: memref<2x128x128xf32, #tpu.memory_space<vmem>>, %arg9: memref<2x1x128xf32, #tpu.memory_space<vmem>>) attributes {dimension_semantics = [#tpu.dimension_semantics<parallel>], iteration_bounds = array<i64: 2>, scalar_prefetch = 0 : i64, scratch_operands = 0 : i64, tpu.core_type = #tpu.core_type<tc>, window_params = [{pipeline_mode = #tpu.pipeline_mode<synchronous>, transform_indices = @transform_0, window_bounds = array<i64: 128, 128>}, {pipeline_mode = #tpu.pipeline_mode<synchronous>, transform_indices = @transform_1, window_bounds = array<i64: 128, 128>}, {transform_indices = @transform_2, window_bounds = array<i64: 2, 128, 3>}, {transform_indices = @transform_3, window_bounds = array<i64: 2, 1, 128>}, {pipeline_mode = #tpu.pipeline_mode<synchronous>, transform_indices = @transform_4, window_bounds = array<i64: 3, 128>}, {pipeline_mode = #tpu.pipeline_mode<synchronous>, transform_indices = @transform_5, window_bounds = array<i64: 128, 1>}, {pipeline_mode = #tpu.pipeline_mode<synchronous>, transform_indices = @transform_6, window_bounds = array<i64: 128, 128>}, {transform_indices = @transform_7, window_bounds = array<i64: 2, 128, 128>}, {transform_indices = @transform_8, window_bounds = array<i64: 2, 1, 128>}]} {
    %c0 = arith.constant 0 : index
    %c0_0 = arith.constant 0 : index
    %c0_1 = arith.constant 0 : index
    %0 = vector.load %arg3[%c0, %c0_0, %c0_1] : memref<2x128x3xf32, #tpu.memory_space<vmem>>, vector<1x128x3xf32>
    %1 = vector.shape_cast %0 : vector<1x128x3xf32> to vector<128x3xf32>
    %c0_2 = arith.constant 0 : index
    %c0_3 = arith.constant 0 : index
    %2 = vector.load %arg5[%c0_2, %c0_3] : memref<3x128xf32, #tpu.memory_space<vmem>>, vector<3x128xf32>
    %cst = arith.constant dense<0.000000e+00> : vector<128x128xf32>
    %3 = tpu.matmul %1, %2, %cst {dimension_numbers = #tpu.dot_dimension_numbers<[1], [0], [0], [1], [0, 0, 1, 1], [], []>} : vector<128x3xf32>, vector<3x128xf32>, vector<128x128xf32> -> vector<128x128xf32>
    %c0_4 = arith.constant 0 : index
    %c0_5 = arith.constant 0 : index
    %4 = vector.load %arg2[%c0_4, %c0_5] : memref<128x128xf32, #tpu.memory_space<vmem>>, vector<128x128xf32>
    %5 = arith.addf %4, %3 : vector<128x128xf32>
    %c0_6 = arith.constant 0 : index
    %c0_7 = arith.constant 0 : index
    %c0_8 = arith.constant 0 : index
    %6 = vector.load %arg4[%c0_6, %c0_7, %c0_8] : memref<2x1x128xf32, #tpu.memory_space<vmem>>, vector<1x1x128xf32>
    %7 = vector.shape_cast %6 : vector<1x1x128xf32> to vector<1x128xf32>
    %8 = vector.broadcast %7 : vector<1x128xf32> to vector<128x128xf32>
    %9 = arith.addf %5, %8 : vector<128x128xf32>
    %cst_9 = arith.constant 0.000000e+00 : f32
    %10 = vector.broadcast %cst_9 : f32 to vector<128x128xf32>
    %11 = arith.maximumf %9, %10 : vector<128x128xf32>
    %c0_10 = arith.constant 0 : index
    %c0_11 = arith.constant 0 : index
    %12 = vector.load %arg6[%c0_10, %c0_11] : memref<128x1xf32, #tpu.memory_space<vmem>>, vector<128x1xf32>
    %cst_12 = arith.constant dense<0.000000e+00> : vector<128x1xf32>
    %13 = tpu.matmul %11, %12, %cst_12 {dimension_numbers = #tpu.dot_dimension_numbers<[1], [0], [0], [1], [0, 0, 1, 1], [], []>} : vector<128x128xf32>, vector<128x1xf32>, vector<128x1xf32> -> vector<128x1xf32>
    %cst_13 = arith.constant dense<0xFF800000> : vector<1xf32>
    %14 = vector.multi_reduction <maximumf>, %13, %cst_13 [0] : vector<128x1xf32> to vector<1xf32>
    %15 = vector.shape_cast %14 : vector<1xf32> to vector<1x1xf32>
    %16 = vector.broadcast %15 : vector<1x1xf32> to vector<128x1xf32>
    %17 = arith.subf %13, %16 : vector<128x1xf32>
    %18 = math.exp %17 : vector<128x1xf32>
    %cst_14 = arith.constant dense<0.000000e+00> : vector<1xf32>
    %19 = vector.multi_reduction <add>, %18, %cst_14 [0] : vector<128x1xf32> to vector<1xf32>
    %20 = vector.shape_cast %19 : vector<1xf32> to vector<1x1xf32>
    %21 = vector.broadcast %20 : vector<1x1xf32> to vector<128x1xf32>
    %22 = arith.divf %18, %21 : vector<128x1xf32>
    %c0_15 = arith.constant 0 : index
    %c0_16 = arith.constant 0 : index
    %23 = vector.load %arg1[%c0_15, %c0_16] : memref<128x128xf32, #tpu.memory_space<vmem>>, vector<128x128xf32>
    %24 = vector.broadcast %22 : vector<128x1xf32> to vector<128x128xf32>
    %25 = arith.mulf %24, %23 : vector<128x128xf32>
    %c0_17 = arith.constant 0 : index
    %c0_18 = arith.constant 0 : index
    %c0_19 = arith.constant 0 : index
    %26 = vector.load %arg8[%c0_17, %c0_18, %c0_19] : memref<2x128x128xf32, #tpu.memory_space<vmem>>, vector<1x128x128xf32>
    %27 = vector.shape_cast %26 : vector<1x128x128xf32> to vector<128x128xf32>
    %28 = vector.shape_cast %25 : vector<128x128xf32> to vector<1x128x128xf32>
    tpu.vector_store %arg8[%c0_17, %c0_18, %c0_19], %28 {strides = array<i32>} : memref<2x128x128xf32, #tpu.memory_space<vmem>>, vector<1x128x128xf32>,
    %c0_20 = arith.constant 0 : index
    %c0_21 = arith.constant 0 : index
    %29 = vector.load %arg7[%c0_20, %c0_21] : memref<128x128xf32, #tpu.memory_space<vmem>>, vector<128x128xf32>
    %30 = vector.broadcast %22 : vector<128x1xf32> to vector<128x128xf32>
    %31 = arith.mulf %29, %30 : vector<128x128xf32>
    %cst_22 = arith.constant dense<0.000000e+00> : vector<128xf32>
    %32 = vector.multi_reduction <add>, %31, %cst_22 [0] : vector<128x128xf32> to vector<128xf32>
    %33 = vector.shape_cast %32 : vector<128xf32> to vector<1x128xf32>
    %c0_23 = arith.constant 0 : index
    %c0_24 = arith.constant 0 : index
    %c0_25 = arith.constant 0 : index
    %34 = vector.load %arg9[%c0_23, %c0_24, %c0_25] : memref<2x1x128xf32, #tpu.memory_space<vmem>>, vector<1x1x128xf32>
    %35 = vector.shape_cast %34 : vector<1x1x128xf32> to vector<1x128xf32>
    %36 = vector.shape_cast %33 : vector<1x128xf32> to vector<1x1x128xf32>
    tpu.vector_store %arg9[%c0_23, %c0_24, %c0_25], %36 {strides = array<i32>} : memref<2x1x128xf32, #tpu.memory_space<vmem>>, vector<1x1x128xf32>,
    %c1 = arith.constant 1 : index
    %c0_26 = arith.constant 0 : index
    %c0_27 = arith.constant 0 : index
    %37 = vector.load %arg3[%c1, %c0_26, %c0_27] : memref<2x128x3xf32, #tpu.memory_space<vmem>>, vector<1x128x3xf32>
    %38 = vector.shape_cast %37 : vector<1x128x3xf32> to vector<128x3xf32>
    %c0_28 = arith.constant 0 : index
    %c0_29 = arith.constant 0 : index
    %39 = vector.load %arg5[%c0_28, %c0_29] : memref<3x128xf32, #tpu.memory_space<vmem>>, vector<3x128xf32>
    %cst_30 = arith.constant dense<0.000000e+00> : vector<128x128xf32>
    %40 = tpu.matmul %38, %39, %cst_30 {dimension_numbers = #tpu.dot_dimension_numbers<[1], [0], [0], [1], [0, 0, 1, 1], [], []>} : vector<128x3xf32>, vector<3x128xf32>, vector<128x128xf32> -> vector<128x128xf32>
    %c0_31 = arith.constant 0 : index
    %c0_32 = arith.constant 0 : index
    %41 = vector.load %arg2[%c0_31, %c0_32] : memref<128x128xf32, #tpu.memory_space<vmem>>, vector<128x128xf32>
    %42 = arith.addf %41, %40 : vector<128x128xf32>
    %c1_33 = arith.constant 1 : index
    %c0_34 = arith.constant 0 : index
    %c0_35 = arith.constant 0 : index
    %43 = vector.load %arg4[%c1_33, %c0_34, %c0_35] : memref<2x1x128xf32, #tpu.memory_space<vmem>>, vector<1x1x128xf32>
    %44 = vector.shape_cast %43 : vector<1x1x128xf32> to vector<1x128xf32>
    %45 = vector.broadcast %44 : vector<1x128xf32> to vector<128x128xf32>
    %46 = arith.addf %42, %45 : vector<128x128xf32>
    %cst_36 = arith.constant 0.000000e+00 : f32
    %47 = vector.broadcast %cst_36 : f32 to vector<128x128xf32>
    %48 = arith.maximumf %46, %47 : vector<128x128xf32>
    %c0_37 = arith.constant 0 : index
    %c0_38 = arith.constant 0 : index
    %49 = vector.load %arg6[%c0_37, %c0_38] : memref<128x1xf32, #tpu.memory_space<vmem>>, vector<128x1xf32>
    %cst_39 = arith.constant dense<0.000000e+00> : vector<128x1xf32>
    %50 = tpu.matmul %48, %49, %cst_39 {dimension_numbers = #tpu.dot_dimension_numbers<[1], [0], [0], [1], [0, 0, 1, 1], [], []>} : vector<128x128xf32>, vector<128x1xf32>, vector<128x1xf32> -> vector<128x1xf32>
    %cst_40 = arith.constant dense<0xFF800000> : vector<1xf32>
    %51 = vector.multi_reduction <maximumf>, %50, %cst_40 [0] : vector<128x1xf32> to vector<1xf32>
    %52 = vector.shape_cast %51 : vector<1xf32> to vector<1x1xf32>
    %53 = vector.broadcast %52 : vector<1x1xf32> to vector<128x1xf32>
    %54 = arith.subf %50, %53 : vector<128x1xf32>
    %55 = math.exp %54 : vector<128x1xf32>
    %cst_41 = arith.constant dense<0.000000e+00> : vector<1xf32>
    %56 = vector.multi_reduction <add>, %55, %cst_41 [0] : vector<128x1xf32> to vector<1xf32>
    %57 = vector.shape_cast %56 : vector<1xf32> to vector<1x1xf32>
    %58 = vector.broadcast %57 : vector<1x1xf32> to vector<128x1xf32>
    %59 = arith.divf %55, %58 : vector<128x1xf32>
    %c0_42 = arith.constant 0 : index
    %c0_43 = arith.constant 0 : index
    %60 = vector.load %arg1[%c0_42, %c0_43] : memref<128x128xf32, #tpu.memory_space<vmem>>, vector<128x128xf32>
    %61 = vector.broadcast %59 : vector<128x1xf32> to vector<128x128xf32>
    %62 = arith.mulf %61, %60 : vector<128x128xf32>
    %c1_44 = arith.constant 1 : index
    %c0_45 = arith.constant 0 : index
    %c0_46 = arith.constant 0 : index
    %63 = vector.load %arg8[%c1_44, %c0_45, %c0_46] : memref<2x128x128xf32, #tpu.memory_space<vmem>>, vector<1x128x128xf32>
    %64 = vector.shape_cast %63 : vector<1x128x128xf32> to vector<128x128xf32>
    %65 = vector.shape_cast %62 : vector<128x128xf32> to vector<1x128x128xf32>
    tpu.vector_store %arg8[%c1_44, %c0_45, %c0_46], %65 {strides = array<i32>} : memref<2x128x128xf32, #tpu.memory_space<vmem>>, vector<1x128x128xf32>,
    %c0_47 = arith.constant 0 : index
    %c0_48 = arith.constant 0 : index
    %66 = vector.load %arg7[%c0_47, %c0_48] : memref<128x128xf32, #tpu.memory_space<vmem>>, vector<128x128xf32>
    %67 = vector.broadcast %59 : vector<128x1xf32> to vector<128x128xf32>
    %68 = arith.mulf %66, %67 : vector<128x128xf32>
    %cst_49 = arith.constant dense<0.000000e+00> : vector<128xf32>
    %69 = vector.multi_reduction <add>, %68, %cst_49 [0] : vector<128x128xf32> to vector<128xf32>
    %70 = vector.shape_cast %69 : vector<128xf32> to vector<1x128xf32>
    %c1_50 = arith.constant 1 : index
    %c0_51 = arith.constant 0 : index
    %c0_52 = arith.constant 0 : index
    %71 = vector.load %arg9[%c1_50, %c0_51, %c0_52] : memref<2x1x128xf32, #tpu.memory_space<vmem>>, vector<1x1x128xf32>
    %72 = vector.shape_cast %71 : vector<1x1x128xf32> to vector<1x128xf32>
    %73 = vector.shape_cast %70 : vector<1x128xf32> to vector<1x1x128xf32>
    tpu.vector_store %arg9[%c1_50, %c0_51, %c0_52], %73 {strides = array<i32>} : memref<2x1x128xf32, #tpu.memory_space<vmem>>, vector<1x1x128xf32>,
    return
  }
  func.func @transform_0(%arg0: i32) -> (i32, i32) {
    %c0_i32 = arith.constant 0 : i32
    %c0_i32_0 = arith.constant 0 : i32
    %c0_i32_1 = arith.constant 0 : i32
    return %c0_i32, %c0_i32_0 : i32, i32
  }
  func.func @transform_1(%arg0: i32) -> (i32, i32) {
    %c0_i32 = arith.constant 0 : i32
    %c0_i32_0 = arith.constant 0 : i32
    %c0_i32_1 = arith.constant 0 : i32
    return %c0_i32, %c0_i32_0 : i32, i32
  }
  func.func @transform_2(%arg0: i32) -> (i32, i32, i32) {
    %c0_i32 = arith.constant 0 : i32
    %c0_i32_0 = arith.constant 0 : i32
    %c0_i32_1 = arith.constant 0 : i32
    return %arg0, %c0_i32, %c0_i32_0 : i32, i32, i32
  }
  func.func @transform_3(%arg0: i32) -> (i32, i32, i32) {
    %c0_i32 = arith.constant 0 : i32
    %c0_i32_0 = arith.constant 0 : i32
    %c0_i32_1 = arith.constant 0 : i32
    return %arg0, %c0_i32, %c0_i32_0 : i32, i32, i32
  }
  func.func @transform_4(%arg0: i32) -> (i32, i32) {
    %c0_i32 = arith.constant 0 : i32
    %c0_i32_0 = arith.constant 0 : i32
    %c0_i32_1 = arith.constant 0 : i32
    return %c0_i32, %c0_i32_0 : i32, i32
  }
  func.func @transform_5(%arg0: i32) -> (i32, i32) {
    %c0_i32 = arith.constant 0 : i32
    %c0_i32_0 = arith.constant 0 : i32
    %c0_i32_1 = arith.constant 0 : i32
    return %c0_i32, %c0_i32_0 : i32, i32
  }
  func.func @transform_6(%arg0: i32) -> (i32, i32) {
    %c0_i32 = arith.constant 0 : i32
    %c0_i32_0 = arith.constant 0 : i32
    %c0_i32_1 = arith.constant 0 : i32
    return %c0_i32, %c0_i32_0 : i32, i32
  }
  func.func @transform_7(%arg0: i32) -> (i32, i32, i32) {
    %c0_i32 = arith.constant 0 : i32
    %c0_i32_0 = arith.constant 0 : i32
    %c0_i32_1 = arith.constant 0 : i32
    return %arg0, %c0_i32, %c0_i32_0 : i32, i32, i32
  }
  func.func @transform_8(%arg0: i32) -> (i32, i32, i32) {
    %c0_i32 = arith.constant 0 : i32
    %c0_i32_0 = arith.constant 0 : i32
    %c0_i32_1 = arith.constant 0 : i32
    return %arg0, %c0_i32, %c0_i32_0 : i32, i32, i32
  }
}

</mosaic_0001>

<llo_original>
// kernel: tpu_custom_call.1
$region0: #{tpu_custom_call.1}
  #allocation0 [shape = 'u32[]', space=smem, size = 0x4, offset = 0x4, fixed_abs, tag = 'smem constant byte address 0x4 - core index']
  #allocation1 [shape = 'u32[144,128]{1,0:T(1,128)}', space=vmem, size = 0x12000, scoped, tag = 'internal scratch']
  %s0 = inlined_call_operand.vmem [shape: f32[128,128], index: 0, kind: input, shape index: {}]
  %s1 = inlined_call_operand.vmem [shape: f32[128,128], index: 1, kind: input, shape index: {}]
  %s2 = inlined_call_operand.vmem [shape: f32[4,128,3], index: 2, kind: input, shape index: {}]
  %s3 = inlined_call_operand.vmem [shape: f32[4,1,128], index: 3, kind: input, shape index: {}]
  %s4 = inlined_call_operand.vmem [shape: f32[3,128], index: 4, kind: input, shape index: {}]
  %s5 = inlined_call_operand.vmem [shape: f32[128,1], index: 5, kind: input, shape index: {}]
  %s6 = inlined_call_operand.vmem [shape: f32[128,128], index: 6, kind: input, shape index: {}]
  %s7 = inlined_call_operand.hbm [shape: f32[4,128,128], index: 7, kind: output, shape index: {0}]
  %s8 = inlined_call_operand.hbm [shape: f32[4,1,128], index: 8, kind: output, shape index: {1}]
  %9 = xla_tuple %s7, %s8
  %s10 = sld [smem:[#allocation0]]
  $region69: #{tpu_custom_call.1} parent=0
    _
  %s12 = ssub.s32 1, %s10
  %s13 = scalar_select 0, %s12, %s10
  $region1: #{tpu_custom_call.1} parent=0
    #allocation2 [shape = 'u8[262144]{0}', space=vmem, size = 0x40000, scoped, tag = 'output window, operand 0']
    #allocation3 [shape = 's32[2]{0}', space=sflag, size = 0x8, scoped, tag = 'scoped memory for tpu_custom_call.1']
    #allocation4 [shape = 'u8[2048]{0}', space=vmem, size = 0x800, scoped, tag = 'output window, operand 1']
    #allocation5 [shape = 's32[2]{0}', space=sflag, size = 0x8, scoped, tag = 'scoped memory for tpu_custom_call.1']
    %14 = vsyncpa [#allocation3], 0
    %s15 = scalar_lea.sflag [#allocation3], 1
    %16 = vsyncpa %s15, 0
    %17 = vsyncpa [#allocation5], 0
    %s18 = scalar_lea.sflag [#allocation5], 1
    %19 = vsyncpa %s18, 0
    loop: start=0, step=1, limit=4
    $region2: #{tpu_custom_call.1} parent=1 // loop_pre_header
      _
    $region3: #{tpu_custom_call.1} parent=1 // loop_header
      %s21 = sphi 0, %s25
      %p22 = scmp.ge.s32.totalorder %s21, 4
      %s29 = sphi 0, %s29
      %s31 = sphi 0, %s29
      %s32 = sphi 0, %s31
      %s46 = sphi 0, %s32
      %s50 = sphi 0, %s50
      %s52 = sphi 0, %s50
      %s53 = sphi 0, %s52
      %s67 = sphi 0, %s53
      %s73 = sphi 0, %s75
      %s76 = sphi 0, %s73
      %s77 = sphi 0, %s76
      %s93 = sphi 0, %s77
      %s99 = sphi 0, %s101
      %s102 = sphi 0, %s99
      %s103 = sphi 0, %s102
      %s119 = sphi 0, %s103
      %s123 = sphi 0, %s123
      %s125 = sphi 0, %s123
      %s126 = sphi 0, %s125
      %s140 = sphi 0, %s126
      %s144 = sphi 0, %s144
      %s146 = sphi 0, %s144
      %s147 = sphi 0, %s146
      %s161 = sphi 0, %s147
      %s165 = sphi 0, %s165
      %s167 = sphi 0, %s165
      %s168 = sphi 0, %s167
      %s182 = sphi 0, %s168
      %s188 = sphi 0, %s190
      %s191 = sphi 0, %s188
      %s192 = sphi 0, %s191
      %s208 = sphi 0, %s192
      %s214 = sphi 0, %s216
      %s217 = sphi 0, %s214
      %s218 = sphi 0, %s217
      %s234 = sphi 0, %s218
    $region4: #{tpu_custom_call.1} parent=1 // loop_header_branch
      %24 = sbr.rel (%p22) target = $region8
    $region5: #{tpu_custom_call.1} parent=1 // loop_body
      %s26 = ssub.s32 %s21, 1
      %s27 = ssub.s32 %s21, 2
      %s28 = sadd.s32 %s21, 1
      %s30 = sadd.s32 %s29, 1
      %p33 = scmp.eq.s32.totalorder %s21, 1
      %p34 = scmp.ne.s32.totalorder %s29, %s31
      %p35 = scmp.eq.s32.totalorder %s21, 0
      %p36 = por %p34, %p35
      %p37 = scmp.ne.s32.totalorder %s29, %s31
      %p38 = scmp.eq.s32.totalorder %s26, 1
      %p39 = por %p37, %p38
      %p40 = scmp.ne.s32.totalorder %s31, %s32
      %p41 = scmp.eq.s32.totalorder %s26, 0
      %p42 = por %p40, %p41
      %p43 = scmp.ne.s32.totalorder %s31, %s32
      %p44 = scmp.eq.s32.totalorder %s27, 1
      %p45 = por %p43, %p44
      %p47 = scmp.ne.s32.totalorder %s32, %s46
      %p48 = scmp.eq.s32.totalorder %s27, 0
      %p49 = por %p47, %p48
      %s51 = sadd.s32 %s50, 1
      %p54 = scmp.eq.s32.totalorder %s21, 1
      %p55 = scmp.ne.s32.totalorder %s50, %s52
      %p56 = scmp.eq.s32.totalorder %s21, 0
      %p57 = por %p55, %p56
      %p58 = scmp.ne.s32.totalorder %s50, %s52
      %p59 = scmp.eq.s32.totalorder %s26, 1
      %p60 = por %p58, %p59
      %p61 = scmp.ne.s32.totalorder %s52, %s53
      %p62 = scmp.eq.s32.totalorder %s26, 0
      %p63 = por %p61, %p62
      %p64 = scmp.ne.s32.totalorder %s52, %s53
      %p65 = scmp.eq.s32.totalorder %s27, 1
      %p66 = por %p64, %p65
      %p68 = scmp.ne.s32.totalorder %s53, %s67
      %p69 = scmp.eq.s32.totalorder %s27, 0
      %p70 = por %p68, %p69
      %s71 = ssub.s32 %s21, %s28
      %p72 = scmp.eq.s32.totalorder %s71, 0
      %s74 = sadd.s32 %s73, 1
      %s75 = scalar_select %p72, %s73, %s74
      %p78 = pneg %p72
      %p79 = scmp.eq.s32.totalorder %s21, 1
      %p80 = por %p78, %p79
      %p81 = scmp.ne.s32.totalorder %s73, %s76
      %p82 = scmp.eq.s32.totalorder %s21, 0
      %p83 = por %p81, %p82
      %p84 = scmp.ne.s32.totalorder %s73, %s76
      %p85 = scmp.eq.s32.totalorder %s26, 1
      %p86 = por %p84, %p85
      %p87 = scmp.ne.s32.totalorder %s76, %s77
      %p88 = scmp.eq.s32.totalorder %s26, 0
      %p89 = por %p87, %p88
      %p90 = scmp.ne.s32.totalorder %s76, %s77
      %p91 = scmp.eq.s32.totalorder %s27, 1
      %p92 = por %p90, %p91
      %p94 = scmp.ne.s32.totalorder %s77, %s93
      %p95 = scmp.eq.s32.totalorder %s27, 0
      %p96 = por %p94, %p95
      %s97 = ssub.s32 %s21, %s28
      %p98 = scmp.eq.s32.totalorder %s97, 0
      %s100 = sadd.s32 %s99, 1
      %s101 = scalar_select %p98, %s99, %s100
      %p104 = pneg %p98
      %p105 = scmp.eq.s32.totalorder %s21, 1
      %p106 = por %p104, %p105
      %p107 = scmp.ne.s32.totalorder %s99, %s102
      %p108 = scmp.eq.s32.totalorder %s21, 0
      %p109 = por %p107, %p108
      %p110 = scmp.ne.s32.totalorder %s99, %s102
      %p111 = scmp.eq.s32.totalorder %s26, 1
      %p112 = por %p110, %p111
      %p113 = scmp.ne.s32.totalorder %s102, %s103
      %p114 = scmp.eq.s32.totalorder %s26, 0
      %p115 = por %p113, %p114
      %p116 = scmp.ne.s32.totalorder %s102, %s103
      %p117 = scmp.eq.s32.totalorder %s27, 1
      %p118 = por %p116, %p117
      %p120 = scmp.ne.s32.totalorder %s103, %s119
      %p121 = scmp.eq.s32.totalorder %s27, 0
      %p122 = por %p120, %p121
      %s124 = sadd.s32 %s123, 1
      %p127 = scmp.eq.s32.totalorder %s21, 1
      %p128 = scmp.ne.s32.totalorder %s123, %s125
      %p129 = scmp.eq.s32.totalorder %s21, 0
      %p130 = por %p128, %p129
      %p131 = scmp.ne.s32.totalorder %s123, %s125
      %p132 = scmp.eq.s32.totalorder %s26, 1
      %p133 = por %p131, %p132
      %p134 = scmp.ne.s32.totalorder %s125, %s126
      %p135 = scmp.eq.s32.totalorder %s26, 0
      %p136 = por %p134, %p135
      %p137 = scmp.ne.s32.totalorder %s125, %s126
      %p138 = scmp.eq.s32.totalorder %s27, 1
      %p139 = por %p137, %p138
      %p141 = scmp.ne.s32.totalorder %s126, %s140
      %p142 = scmp.eq.s32.totalorder %s27, 0
      %p143 = por %p141, %p142
      %s145 = sadd.s32 %s144, 1
      %p148 = scmp.eq.s32.totalorder %s21, 1
      %p149 = scmp.ne.s32.totalorder %s144, %s146
      %p150 = scmp.eq.s32.totalorder %s21, 0
      %p151 = por %p149, %p150
      %p152 = scmp.ne.s32.totalorder %s144, %s146
      %p153 = scmp.eq.s32.totalorder %s26, 1
      %p154 = por %p152, %p153
      %p155 = scmp.ne.s32.totalorder %s146, %s147
      %p156 = scmp.eq.s32.totalorder %s26, 0
      %p157 = por %p155, %p156
      %p158 = scmp.ne.s32.totalorder %s146, %s147
      %p159 = scmp.eq.s32.totalorder %s27, 1
      %p160 = por %p158, %p159
      %p162 = scmp.ne.s32.totalorder %s147, %s161
      %p163 = scmp.eq.s32.totalorder %s27, 0
      %p164 = por %p162, %p163
      %s166 = sadd.s32 %s165, 1
      %p169 = scmp.eq.s32.totalorder %s21, 1
      %p170 = scmp.ne.s32.totalorder %s165, %s167
      %p171 = scmp.eq.s32.totalorder %s21, 0
      %p172 = por %p170, %p171
      %p173 = scmp.ne.s32.totalorder %s165, %s167
      %p174 = scmp.eq.s32.totalorder %s26, 1
      %p175 = por %p173, %p174
      %p176 = scmp.ne.s32.totalorder %s167, %s168
      %p177 = scmp.eq.s32.totalorder %s26, 0
      %p178 = por %p176, %p177
      %p179 = scmp.ne.s32.totalorder %s167, %s168
      %p180 = scmp.eq.s32.totalorder %s27, 1
      %p181 = por %p179, %p180
      %p183 = scmp.ne.s32.totalorder %s168, %s182
      %p184 = scmp.eq.s32.totalorder %s27, 0
      %p185 = por %p183, %p184
      %s186 = ssub.s32 %s21, %s28
      %p187 = scmp.eq.s32.totalorder %s186, 0
      %s189 = sadd.s32 %s188, 1
      %s190 = scalar_select %p187, %s188, %s189
      %p193 = pneg %p187
      %p194 = scmp.eq.s32.totalorder %s21, 1
      %p195 = por %p193, %p194
      %p196 = scmp.ne.s32.totalorder %s188, %s191
      %p197 = scmp.eq.s32.totalorder %s21, 0
      %p198 = por %p196, %p197
      %p199 = scmp.ne.s32.totalorder %s188, %s191
      %p200 = scmp.eq.s32.totalorder %s26, 1
      %p201 = por %p199, %p200
      %p202 = scmp.ne.s32.totalorder %s191, %s192
      %p203 = scmp.eq.s32.totalorder %s26, 0
      %p204 = por %p202, %p203
      %p205 = scmp.ne.s32.totalorder %s191, %s192
      %p206 = scmp.eq.s32.totalorder %s27, 1
      %p207 = por %p205, %p206
      %p209 = scmp.ne.s32.totalorder %s192, %s208
      %p210 = scmp.eq.s32.totalorder %s27, 0
      %p211 = por %p209, %p210
      %s212 = ssub.s32 %s21, %s28
      %p213 = scmp.eq.s32.totalorder %s212, 0
      %s215 = sadd.s32 %s214, 1
      %s216 = scalar_select %p213, %s214, %s215
      %p219 = pneg %p213
      %p220 = scmp.eq.s32.totalorder %s21, 1
      %p221 = por %p219, %p220
      %p222 = scmp.ne.s32.totalorder %s214, %s217
      %p223 = scmp.eq.s32.totalorder %s21, 0
      %p224 = por %p222, %p223
      %p225 = scmp.ne.s32.totalorder %s214, %s217
      %p226 = scmp.eq.s32.totalorder %s26, 1
      %p227 = por %p225, %p226
      %p228 = scmp.ne.s32.totalorder %s217, %s218
      %p229 = scmp.eq.s32.totalorder %s26, 0
      %p230 = por %p228, %p229
      %p231 = scmp.ne.s32.totalorder %s217, %s218
      %p232 = scmp.eq.s32.totalorder %s27, 1
      %p233 = por %p231, %p232
      %p235 = scmp.ne.s32.totalorder %s218, %s234
      %p236 = scmp.eq.s32.totalorder %s27, 0
      %p237 = por %p235, %p236
      %p238 = scmp.le.s32.totalorder 1, %s21
      %p239 = scmp.lt.s32.totalorder %s21, 3
      %p240 = pnand %p238, %p239
      %p241 = pneg %p240
      // Predicated region
      $region9: #{tpu_custom_call.1} parent=5 // pred_check
        _
      $region10: #{tpu_custom_call.1} parent=5 // pred_check_branch
        %243 = sbr.rel (%p240) target = $region12
      $region11: #{tpu_custom_call.1} parent=5 // pred_region
        %s244 = ssub.s32 %s21, 1
        // Predicated region
        $region13: #{tpu_custom_call.1} parent=11 // pred_check
          %p245 = pneg %p42
        $region14: #{tpu_custom_call.1} parent=11 // pred_check_branch
          %247 = sbr.rel (%p245) target = $region16
        $region15: #{tpu_custom_call.1} parent=11 // pred_region
          _
        $region16: #{tpu_custom_call.1} parent=11 // pred_fallthru
          _
        // Predicated region
        $region17: #{tpu_custom_call.1} parent=11 // pred_check
          %p248 = pneg %p63
        $region18: #{tpu_custom_call.1} parent=11 // pred_check_branch
          %250 = sbr.rel (%p248) target = $region20
        $region19: #{tpu_custom_call.1} parent=11 // pred_region
          _
        $region20: #{tpu_custom_call.1} parent=11 // pred_fallthru
          _
        // Predicated region
        $region21: #{tpu_custom_call.1} parent=11 // pred_check
          %p251 = pneg %p136
        $region22: #{tpu_custom_call.1} parent=11 // pred_check_branch
          %253 = sbr.rel (%p251) target = $region24
        $region23: #{tpu_custom_call.1} parent=11 // pred_region
          _
        $region24: #{tpu_custom_call.1} parent=11 // pred_fallthru
          _
        // Predicated region
        $region25: #{tpu_custom_call.1} parent=11 // pred_check
          %p254 = pneg %p157
        $region26: #{tpu_custom_call.1} parent=11 // pred_check_branch
          %256 = sbr.rel (%p254) target = $region28
        $region27: #{tpu_custom_call.1} parent=11 // pred_region
          _
        $region28: #{tpu_custom_call.1} parent=11 // pred_fallthru
          _
        // Predicated region
        $region29: #{tpu_custom_call.1} parent=11 // pred_check
          %p257 = pneg %p178
        $region30: #{tpu_custom_call.1} parent=11 // pred_check_branch
          %259 = sbr.rel (%p257) target = $region32
        $region31: #{tpu_custom_call.1} parent=11 // pred_region
          _
        $region32: #{tpu_custom_call.1} parent=11 // pred_fallthru
          _
      $region12: #{tpu_custom_call.1} parent=5 // pred_fallthru
        _
      %p260 = scmp.lt.s32.totalorder %s21, 2
      // Predicated region
      $region33: #{tpu_custom_call.1} parent=5 // pred_check
        %p261 = pneg %p260
      $region34: #{tpu_custom_call.1} parent=5 // pred_check_branch
        %263 = sbr.rel (%p261) target = $region36
      $region35: #{tpu_custom_call.1} parent=5 // pred_region
        // Predicated region
        $region37: #{tpu_custom_call.1} parent=35 // pred_check
          %p264 = pneg %p83
        $region38: #{tpu_custom_call.1} parent=35 // pred_check_branch
          %266 = sbr.rel (%p264) target = $region40
        $region39: #{tpu_custom_call.1} parent=35 // pred_region
          %s267 = smul.u32 2, %s21
          %p268 = scmp.lt.s32.totalorder %s267, 3
          %s269 = scalar_select %p268, %s267, 3
          %s270 = smul.addr %s269, 16
          %s271 = smul.addr %s270, 8
          %s272 = scalar_lea.vmem %s2, %s271
          %s273 = smul.u32 2, %s21
        $region40: #{tpu_custom_call.1} parent=35 // pred_fallthru
          _
        // Predicated region
        $region41: #{tpu_custom_call.1} parent=35 // pred_check
          %p274 = pneg %p109
        $region42: #{tpu_custom_call.1} parent=35 // pred_check_branch
          %276 = sbr.rel (%p274) target = $region44
        $region43: #{tpu_custom_call.1} parent=35 // pred_region
          %s277 = smul.u32 2, %s21
          %p278 = scmp.lt.s32.totalorder %s277, 3
          %s279 = scalar_select %p278, %s277, 3
          %s280 = scalar_lea.vmem %s3, %s279
          %s281 = smul.u32 2, %s21
        $region44: #{tpu_custom_call.1} parent=35 // pred_fallthru
          _
      $region36: #{tpu_custom_call.1} parent=5 // pred_fallthru
        _
      %p282 = scmp.le.s32.totalorder 1, %s21
      %p283 = scmp.lt.s32.totalorder %s21, 3
      %p284 = pnand %p282, %p283
      %p285 = pneg %p284
      // Predicated region
      $region45: #{tpu_custom_call.1} parent=5 // pred_check
        _
      $region46: #{tpu_custom_call.1} parent=5 // pred_check_branch
        %287 = sbr.rel (%p284) target = $region48
      $region47: #{tpu_custom_call.1} parent=5 // pred_region
        %s288 = ssub.s32 %s21, 1
        %p289 = pneg %p42
        %p290 = pneg %p39
        %p291 = pneg %p63
        %p292 = pneg %p60
        %s293 = smul.u32 2, %s26
        %p294 = scmp.lt.s32.totalorder %s293, 3
        %s295 = scalar_select %p294, %s293, 3
        %s296 = smul.addr %s295, 16
        %s297 = smul.addr %s296, 8
        %s298 = scalar_lea.vmem %s2, %s297
        %p299 = pneg %p89
        %p300 = pneg %p86
        %s301 = smul.u32 2, %s26
        %p302 = scmp.lt.s32.totalorder %s301, 3
        %s303 = scalar_select %p302, %s301, 3
        %s304 = scalar_lea.vmem %s3, %s303
        %p305 = pneg %p115
        %p306 = pneg %p112
        %p307 = pneg %p136
        %p308 = pneg %p133
        %p309 = pneg %p157
        %p310 = pneg %p154
        %p311 = pneg %p178
        %p312 = pneg %p175
        %p313 = pneg %p204
        %p314 = pneg %p201
        %s315 = sand.u32 %s191, 1
        %s316 = scalar_lea.sflag [#allocation3], %s315
        %s317 = sand.u32 %s191, 1
        %s318 = smul.addr %s317, 256
        %s319 = scalar_lea.vmem [#allocation2], %s318
        %p320 = pneg %p230
        %p321 = pneg %p227
        %s322 = sand.u32 %s217, 1
        %s323 = scalar_lea.sflag [#allocation5], %s322
        %s324 = sand.u32 %s217, 1
        %s325 = smul.addr %s324, 2
        %s326 = scalar_lea.vmem [#allocation4], %s325
        %s327 = smul.u32 2, %s26
        %p328 = scmp.lt.s32.totalorder %s327, 3
        %s329 = scalar_select %p328, %s327, 3
        %s330 = smul.addr %s329, 16
        %s331 = smul.addr %s330, 8
        %s332 = scalar_lea.vmem %s2, %s331
        %s333 = smul.u32 2, %s26
        %s334 = smul.u32 2, %s26
        %p335 = scmp.lt.s32.totalorder %s334, 3
        %s336 = scalar_select %p335, %s334, 3
        %s337 = scalar_lea.vmem %s3, %s336
        %s338 = smul.u32 2, %s26
        %s339 = smul.u32 2, %s26
        %s340 = smul.u32 2, %s26
        %v341 = vld [vmem:[%s332] sm:$0xff]
        %v342 = vld [vmem:[%s332 + $0x8] sm:$0xff]
        %v343 = vld [vmem:[%s332 + $0x10] sm:$0xff]
        %v344 = vld [vmem:[%s332 + $0x18] sm:$0xff]
        %v345 = vld [vmem:[%s332 + $0x20] sm:$0xff]
        %v346 = vld [vmem:[%s332 + $0x28] sm:$0xff]
        %v347 = vld [vmem:[%s332 + $0x30] sm:$0xff]
        %v348 = vld [vmem:[%s332 + $0x38] sm:$0xff]
        %v349 = vld [vmem:[%s332 + $0x40] sm:$0xff]
        %v350 = vld [vmem:[%s332 + $0x48] sm:$0xff]
        %v351 = vld [vmem:[%s332 + $0x50] sm:$0xff]
        %v352 = vld [vmem:[%s332 + $0x58] sm:$0xff]
        %v353 = vld [vmem:[%s332 + $0x60] sm:$0xff]
        %v354 = vld [vmem:[%s332 + $0x68] sm:$0xff]
        %v355 = vld [vmem:[%s332 + $0x70] sm:$0xff]
        %v356 = vld [vmem:[%s332 + $0x78] sm:$0xff]
        %v357 = vld [vmem:[%s4] sm:$0x7]
        %vm358 = vcmask 23552
        %v360 = vsel %vm358, %v341, 0
        %v363 = vsel %vm358, %v342, 0
        %v366 = vsel %vm358, %v343, 0
        %v369 = vsel %vm358, %v344, 0
        %v372 = vsel %vm358, %v345, 0
        %v375 = vsel %vm358, %v346, 0
        %v378 = vsel %vm358, %v347, 0
        %v381 = vsel %vm358, %v348, 0
        %v384 = vsel %vm358, %v349, 0
        %v387 = vsel %vm358, %v350, 0
        %v390 = vsel %vm358, %v351, 0
        %v393 = vsel %vm358, %v352, 0
        %v396 = vsel %vm358, %v353, 0
        %v399 = vsel %vm358, %v354, 0
        %v402 = vsel %vm358, %v355, 0
        %v405 = vsel %vm358, %v356, 0
        %vm407 = vcmask 1042432
        %v409 = vsel %vm407, %v357, 0
        %411 = vmatprep.subr.mxu0 0.0
        %412 = vmatpush1.msra.mxu0 %v409
        %413 = vmatprep.subr.mxu0 0.0
        %414 = vmatpush1.msra.mxu0 0.0
        %415 = vmatprep.subr.mxu0 0.0
        %416 = vmatpush1.msra.mxu0 0.0
        %417 = vmatprep.subr.mxu0 0.0
        %418 = vmatpush1.msra.mxu0 0.0
        %419 = vmatprep.subr.mxu0 0.0
        %420 = vmatpush1.msra.mxu0 0.0
        %421 = vmatprep.subr.mxu0 0.0
        %422 = vmatpush1.msra.mxu0 0.0
        %423 = vmatprep.subr.mxu0 0.0
        %424 = vmatpush1.msra.mxu0 0.0
        %425 = vmatprep.subr.mxu0 0.0
        %426 = vmatpush1.msra.mxu0 0.0
        %427 = vmatprep.subr.mxu0 0.0
        %428 = vmatpush1.msra.mxu0 0.0
        %429 = vmatprep.subr.mxu0 0.0
        %430 = vmatpush1.msra.mxu0 0.0
        %431 = vmatprep.subr.mxu0 0.0
        %432 = vmatpush1.msra.mxu0 0.0
        %433 = vmatprep.subr.mxu0 0.0
        %434 = vmatpush1.msra.mxu0 0.0
        %435 = vmatprep.subr.mxu0 0.0
        %436 = vmatpush1.msra.mxu0 0.0
        %437 = vmatprep.subr.mxu0 0.0
        %438 = vmatpush1.msra.mxu0 0.0
        %439 = vmatprep.subr.mxu0 0.0
        %440 = vmatpush1.msra.mxu0 0.0
        %441 = vmatprep.subr.mxu0 0.0
        %442 = vmatpush1.msra.mxu0 0.0
        %443 = vmatprep.subr.mxu0 0.0
        %444 = vmatpush1.msra.mxu0 0.0
        %445 = vmatprep.subr.mxu0 0.0
        %446 = vmatpush1.msra.mxu0 0.0
        %447 = vmatprep.subr.mxu0 0.0
        %448 = vmatpush1.msra.mxu0 0.0
        %449 = vmatprep.subr.mxu0 0.0
        %450 = vmatpush1.msra.mxu0 0.0
        %451 = vmatprep.subr.mxu0 0.0
        %452 = vmatpush1.msra.mxu0 0.0
        %453 = vmatprep.subr.mxu0 0.0
        %454 = vmatpush1.msra.mxu0 0.0
        %455 = vmatprep.subr.mxu0 0.0
        %456 = vmatpush1.msra.mxu0 0.0
        %457 = vmatprep.subr.mxu0 0.0
        %458 = vmatpush1.msra.mxu0 0.0
        %459 = vmatprep.subr.mxu0 0.0
        %460 = vmatpush1.msra.mxu0 0.0
        %461 = vmatprep.subr.mxu0 0.0
        %462 = vmatpush1.msra.mxu0 0.0
        %463 = vmatprep.subr.mxu0 0.0
        %464 = vmatpush1.msra.mxu0 0.0
        %465 = vmatprep.subr.mxu0 0.0
        %466 = vmatpush1.msra.mxu0 0.0
        %467 = vmatprep.subr.mxu0 0.0
        %468 = vmatpush1.msra.mxu0 0.0
        %469 = vmatprep.subr.mxu0 0.0
        %470 = vmatpush1.msra.mxu0 0.0
        %471 = vmatprep.subr.mxu0 0.0
        %472 = vmatpush1.msra.mxu0 0.0
        %473 = vmatprep.subr.mxu0 0.0
        %474 = vmatpush1.msra.mxu0 0.0
        %475 = vmatprep.mubr.f32.mxu0 0.0
        %476 = vmatmul.mubr.f32.gmra.mrb[0].mxu0 %v360
        %v477 = vpop.f32.mrb[0].mxu0
        %v478 = vadd.f32 0.0, %v477
        %v479 = vpop.f32.mrb[0].mxu0
        %480 = vmatprep.mubr.f32.mxu0 0.0
        %481 = vmatmul.mubr.f32.gmra.mrb[0].mxu0 %v363
        %v482 = vpop.f32.mrb[0].mxu0
        %v483 = vadd.f32 0.0, %v482
        %v484 = vpop.f32.mrb[0].mxu0
        %485 = vmatprep.mubr.f32.mxu0 0.0
        %486 = vmatmul.mubr.f32.gmra.mrb[0].mxu0 %v366
        %v487 = vpop.f32.mrb[0].mxu0
        %v488 = vadd.f32 0.0, %v487
        %v489 = vpop.f32.mrb[0].mxu0
        %490 = vmatprep.mubr.f32.mxu0 0.0
        %491 = vmatmul.mubr.f32.gmra.mrb[0].mxu0 %v369
        %v492 = vpop.f32.mrb[0].mxu0
        %v493 = vadd.f32 0.0, %v492
        %v494 = vpop.f32.mrb[0].mxu0
        %495 = vmatprep.mubr.f32.mxu0 0.0
        %496 = vmatmul.mubr.f32.gmra.mrb[0].mxu0 %v372
        %v497 = vpop.f32.mrb[0].mxu0
        %v498 = vadd.f32 0.0, %v497
        %v499 = vpop.f32.mrb[0].mxu0
        %500 = vmatprep.mubr.f32.mxu0 0.0
        %501 = vmatmul.mubr.f32.gmra.mrb[0].mxu0 %v375
        %v502 = vpop.f32.mrb[0].mxu0
        %v503 = vadd.f32 0.0, %v502
        %v504 = vpop.f32.mrb[0].mxu0
        %505 = vmatprep.mubr.f32.mxu0 0.0
        %506 = vmatmul.mubr.f32.gmra.mrb[0].mxu0 %v378
        %v507 = vpop.f32.mrb[0].mxu0
        %v508 = vadd.f32 0.0, %v507
        %v509 = vpop.f32.mrb[0].mxu0
        %510 = vmatprep.mubr.f32.mxu0 0.0
        %511 = vmatmul.mubr.f32.gmra.mrb[0].mxu0 %v381
        %v512 = vpop.f32.mrb[0].mxu0
        %v513 = vadd.f32 0.0, %v512
        %v514 = vpop.f32.mrb[0].mxu0
        %515 = vmatprep.mubr.f32.mxu0 0.0
        %516 = vmatmul.mubr.f32.gmra.mrb[0].mxu0 %v384
        %v517 = vpop.f32.mrb[0].mxu0
        %v518 = vadd.f32 0.0, %v517
        %v519 = vpop.f32.mrb[0].mxu0
        %520 = vmatprep.mubr.f32.mxu0 0.0
        %521 = vmatmul.mubr.f32.gmra.mrb[0].mxu0 %v387
        %v522 = vpop.f32.mrb[0].mxu0
        %v523 = vadd.f32 0.0, %v522
        %v524 = vpop.f32.mrb[0].mxu0
        %525 = vmatprep.mubr.f32.mxu0 0.0
        %526 = vmatmul.mubr.f32.gmra.mrb[0].mxu0 %v390
        %v527 = vpop.f32.mrb[0].mxu0
        %v528 = vadd.f32 0.0, %v527
        %v529 = vpop.f32.mrb[0].mxu0
        %530 = vmatprep.mubr.f32.mxu0 0.0
        %531 = vmatmul.mubr.f32.gmra.mrb[0].mxu0 %v393
        %v532 = vpop.f32.mrb[0].mxu0
        %v533 = vadd.f32 0.0, %v532
        %v534 = vpop.f32.mrb[0].mxu0
        %535 = vmatprep.mubr.f32.mxu0 0.0
        %536 = vmatmul.mubr.f32.gmra.mrb[0].mxu0 %v396
        %v537 = vpop.f32.mrb[0].mxu0
        %v538 = vadd.f32 0.0, %v537
        %v539 = vpop.f32.mrb[0].mxu0
        %540 = vmatprep.mubr.f32.mxu0 0.0
        %541 = vmatmul.mubr.f32.gmra.mrb[0].mxu0 %v399
        %v542 = vpop.f32.mrb[0].mxu0
        %v543 = vadd.f32 0.0, %v542
        %v544 = vpop.f32.mrb[0].mxu0
        %545 = vmatprep.mubr.f32.mxu0 0.0
        %546 = vmatmul.mubr.f32.gmra.mrb[0].mxu0 %v402
        %v547 = vpop.f32.mrb[0].mxu0
        %v548 = vadd.f32 0.0, %v547
        %v549 = vpop.f32.mrb[0].mxu0
        %550 = vmatprep.mubr.f32.mxu0 0.0
        %551 = vmatmul.mubr.f32.gmra.mrb[0].mxu0 %v405
        %v552 = vpop.f32.mrb[0].mxu0
        %v553 = vadd.f32 0.0, %v552
        %v554 = vpop.f32.mrb[0].mxu0
        %555 = vdwg.mxu0
        %v556 = vld [vmem:[%s1] sm:$0xff]
        %v557 = vld [vmem:[%s1 + $0x8] sm:$0xff]
        %v558 = vld [vmem:[%s1 + $0x10] sm:$0xff]
        %v559 = vld [vmem:[%s1 + $0x18] sm:$0xff]
        %v560 = vld [vmem:[%s1 + $0x20] sm:$0xff]
        %v561 = vld [vmem:[%s1 + $0x28] sm:$0xff]
        %v562 = vld [vmem:[%s1 + $0x30] sm:$0xff]
        %v563 = vld [vmem:[%s1 + $0x38] sm:$0xff]
        %v564 = vld [vmem:[%s1 + $0x40] sm:$0xff]
        %v565 = vld [vmem:[%s1 + $0x48] sm:$0xff]
        %v566 = vld [vmem:[%s1 + $0x50] sm:$0xff]
        %v567 = vld [vmem:[%s1 + $0x58] sm:$0xff]
        %v568 = vld [vmem:[%s1 + $0x60] sm:$0xff]
        %v569 = vld [vmem:[%s1 + $0x68] sm:$0xff]
        %v570 = vld [vmem:[%s1 + $0x70] sm:$0xff]
        %v571 = vld [vmem:[%s1 + $0x78] sm:$0xff]
        %v572 = vadd.f32 %v556, %v478
        %v573 = vadd.f32 %v557, %v483
        %v574 = vadd.f32 %v558, %v488
        %v575 = vadd.f32 %v559, %v493
        %v576 = vadd.f32 %v560, %v498
        %v577 = vadd.f32 %v561, %v503
        %v578 = vadd.f32 %v562, %v508
        %v579 = vadd.f32 %v563, %v513
        %v580 = vadd.f32 %v564, %v518
        %v581 = vadd.f32 %v565, %v523
        %v582 = vadd.f32 %v566, %v528
        %v583 = vadd.f32 %v567, %v533
        %v584 = vadd.f32 %v568, %v538
        %v585 = vadd.f32 %v569, %v543
        %v586 = vadd.f32 %v570, %v548
        %v587 = vadd.f32 %v571, %v553
        %v588 = vld [vmem:[%s337] sm:$0x1]
        %v590 = vlaneseq
        %v591 = vshrl.u32 %v590, 7
        %v592 = vsub.s32 0, %v591
        %v593 = vrot.slane %v588, %v592
        %v595 = vadd.f32 %v572, %v593
        %v596 = vadd.f32 %v573, %v593
        %v597 = vadd.f32 %v574, %v593
        %v598 = vadd.f32 %v575, %v593
        %v599 = vadd.f32 %v576, %v593
        %v600 = vadd.f32 %v577, %v593
        %v601 = vadd.f32 %v578, %v593
        %v602 = vadd.f32 %v579, %v593
        %v603 = vadd.f32 %v580, %v593
        %v604 = vadd.f32 %v581, %v593
        %v605 = vadd.f32 %v582, %v593
        %v606 = vadd.f32 %v583, %v593
        %v607 = vadd.f32 %v584, %v593
        %v608 = vadd.f32 %v585, %v593
        %v609 = vadd.f32 %v586, %v593
        %v610 = vadd.f32 %v587, %v593
        %v611 = vmax.f32 %v595, 0.0
        %v612 = vmax.f32 %v596, 0.0
        %v613 = vmax.f32 %v597, 0.0
        %v614 = vmax.f32 %v598, 0.0
        %v615 = vmax.f32 %v599, 0.0
        %v616 = vmax.f32 %v600, 0.0
        %v617 = vmax.f32 %v601, 0.0
        %v618 = vmax.f32 %v602, 0.0
        %v619 = vmax.f32 %v603, 0.0
        %v620 = vmax.f32 %v604, 0.0
        %v621 = vmax.f32 %v605, 0.0
        %v622 = vmax.f32 %v606, 0.0
        %v623 = vmax.f32 %v607, 0.0
        %v624 = vmax.f32 %v608, 0.0
        %v625 = vmax.f32 %v609, 0.0
        %v626 = vmax.f32 %v610, 0.0
        %v627 = vld [vmem:[%s5] sm:$0xff]
        %v628 = vld [vmem:[%s5 + $0x8] sm:$0xff]
        %v629 = vld [vmem:[%s5 + $0x10] sm:$0xff]
        %v630 = vld [vmem:[%s5 + $0x18] sm:$0xff]
        %v631 = vld [vmem:[%s5 + $0x20] sm:$0xff]
        %v632 = vld [vmem:[%s5 + $0x28] sm:$0xff]
        %v633 = vld [vmem:[%s5 + $0x30] sm:$0xff]
        %v634 = vld [vmem:[%s5 + $0x38] sm:$0xff]
        %v635 = vld [vmem:[%s5 + $0x40] sm:$0xff]
        %v636 = vld [vmem:[%s5 + $0x48] sm:$0xff]
        %v637 = vld [vmem:[%s5 + $0x50] sm:$0xff]
        %v638 = vld [vmem:[%s5 + $0x58] sm:$0xff]
        %v639 = vld [vmem:[%s5 + $0x60] sm:$0xff]
        %v640 = vld [vmem:[%s5 + $0x68] sm:$0xff]
        %v641 = vld [vmem:[%s5 + $0x70] sm:$0xff]
        %v642 = vld [vmem:[%s5 + $0x78] sm:$0xff]
        %643 = vmatprep.subr.mxu0 0.0
        %644 = vmatpush1.msra.mxu0 %v627
        %645 = vmatprep.subr.mxu0 0.0
        %646 = vmatpush1.msra.mxu0 %v628
        %647 = vmatprep.subr.mxu0 0.0
        %648 = vmatpush1.msra.mxu0 %v629
        %649 = vmatprep.subr.mxu0 0.0
        %650 = vmatpush1.msra.mxu0 %v630
        %651 = vmatprep.subr.mxu0 0.0
        %652 = vmatpush1.msra.mxu0 %v631
        %653 = vmatprep.subr.mxu0 0.0
        %654 = vmatpush1.msra.mxu0 %v632
        %655 = vmatprep.subr.mxu0 0.0
        %656 = vmatpush1.msra.mxu0 %v633
        %657 = vmatprep.subr.mxu0 0.0
        %658 = vmatpush1.msra.mxu0 %v634
        %659 = vmatprep.subr.mxu0 0.0
        %660 = vmatpush1.msra.mxu0 %v635
        %661 = vmatprep.subr.mxu0 0.0
        %662 = vmatpush1.msra.mxu0 %v636
        %663 = vmatprep.subr.mxu0 0.0
        %664 = vmatpush1.msra.mxu0 %v637
        %665 = vmatprep.subr.mxu0 0.0
        %666 = vmatpush1.msra.mxu0 %v638
        %667 = vmatprep.subr.mxu0 0.0
        %668 = vmatpush1.msra.mxu0 %v639
        %669 = vmatprep.subr.mxu0 0.0
        %670 = vmatpush1.msra.mxu0 %v640
        %671 = vmatprep.subr.mxu0 0.0
        %672 = vmatpush1.msra.mxu0 %v641
        %673 = vmatprep.subr.mxu0 0.0
        %674 = vmatpush1.msra.mxu0 %v642
        %675 = vmatprep.subr.mxu0 0.0
        %676 = vmatpush1.msra.mxu0 0.0
        %677 = vmatprep.subr.mxu0 0.0
        %678 = vmatpush1.msra.mxu0 0.0
        %679 = vmatprep.subr.mxu0 0.0
        %680 = vmatpush1.msra.mxu0 0.0
        %681 = vmatprep.subr.mxu0 0.0
        %682 = vmatpush1.msra.mxu0 0.0
        %683 = vmatprep.subr.mxu0 0.0
        %684 = vmatpush1.msra.mxu0 0.0
        %685 = vmatprep.subr.mxu0 0.0
        %686 = vmatpush1.msra.mxu0 0.0
        %687 = vmatprep.subr.mxu0 0.0
        %688 = vmatpush1.msra.mxu0 0.0
        %689 = vmatprep.subr.mxu0 0.0
        %690 = vmatpush1.msra.mxu0 0.0
        %691 = vmatprep.subr.mxu0 0.0
        %692 = vmatpush1.msra.mxu0 0.0
        %693 = vmatprep.subr.mxu0 0.0
        %694 = vmatpush1.msra.mxu0 0.0
        %695 = vmatprep.subr.mxu0 0.0
        %696 = vmatpush1.msra.mxu0 0.0
        %697 = vmatprep.subr.mxu0 0.0
        %698 = vmatpush1.msra.mxu0 0.0
        %699 = vmatprep.subr.mxu0 0.0
        %700 = vmatpush1.msra.mxu0 0.0
        %701 = vmatprep.subr.mxu0 0.0
        %702 = vmatpush1.msra.mxu0 0.0
        %703 = vmatprep.subr.mxu0 0.0
        %704 = vmatpush1.msra.mxu0 0.0
        %705 = vmatprep.subr.mxu0 0.0
        %706 = vmatpush1.msra.mxu0 0.0
        %707 = vmatprep.mubr.f32.mxu0 0.0
        %708 = vmatmul.mubr.f32.gmra.mrb[0].mxu0 %v611
        %v709 = vpop.f32.mrb[0].mxu0
        %v710 = vadd.f32 0.0, %v709
        %v711 = vpop.f32.mrb[0].mxu0
        %712 = vmatprep.mubr.f32.mxu0 0.0
        %713 = vmatmul.mubr.f32.gmra.mrb[0].mxu0 %v612
        %v714 = vpop.f32.mrb[0].mxu0
        %v715 = vadd.f32 0.0, %v714
        %v716 = vpop.f32.mrb[0].mxu0
        %717 = vmatprep.mubr.f32.mxu0 0.0
        %718 = vmatmul.mubr.f32.gmra.mrb[0].mxu0 %v613
        %v719 = vpop.f32.mrb[0].mxu0
        %v720 = vadd.f32 0.0, %v719
        %v721 = vpop.f32.mrb[0].mxu0
        %722 = vmatprep.mubr.f32.mxu0 0.0
        %723 = vmatmul.mubr.f32.gmra.mrb[0].mxu0 %v614
        %v724 = vpop.f32.mrb[0].mxu0
        %v725 = vadd.f32 0.0, %v724
        %v726 = vpop.f32.mrb[0].mxu0
        %727 = vmatprep.mubr.f32.mxu0 0.0
        %728 = vmatmul.mubr.f32.gmra.mrb[0].mxu0 %v615
        %v729 = vpop.f32.mrb[0].mxu0
        %v730 = vadd.f32 0.0, %v729
        %v731 = vpop.f32.mrb[0].mxu0
        %732 = vmatprep.mubr.f32.mxu0 0.0
        %733 = vmatmul.mubr.f32.gmra.mrb[0].mxu0 %v616
        %v734 = vpop.f32.mrb[0].mxu0
        %v735 = vadd.f32 0.0, %v734
        %v736 = vpop.f32.mrb[0].mxu0
        %737 = vmatprep.mubr.f32.mxu0 0.0
        %738 = vmatmul.mubr.f32.gmra.mrb[0].mxu0 %v617
        %v739 = vpop.f32.mrb[0].mxu0
        %v740 = vadd.f32 0.0, %v739
        %v741 = vpop.f32.mrb[0].mxu0
        %742 = vmatprep.mubr.f32.mxu0 0.0
        %743 = vmatmul.mubr.f32.gmra.mrb[0].mxu0 %v618
        %v744 = vpop.f32.mrb[0].mxu0
        %v745 = vadd.f32 0.0, %v744
        %v746 = vpop.f32.mrb[0].mxu0
        %747 = vmatprep.mubr.f32.mxu0 0.0
        %748 = vmatmul.mubr.f32.gmra.mrb[0].mxu0 %v619
        %v749 = vpop.f32.mrb[0].mxu0
        %v750 = vadd.f32 0.0, %v749
        %v751 = vpop.f32.mrb[0].mxu0
        %752 = vmatprep.mubr.f32.mxu0 0.0
        %753 = vmatmul.mubr.f32.gmra.mrb[0].mxu0 %v620
        %v754 = vpop.f32.mrb[0].mxu0
        %v755 = vadd.f32 0.0, %v754
        %v756 = vpop.f32.mrb[0].mxu0
        %757 = vmatprep.mubr.f32.mxu0 0.0
        %758 = vmatmul.mubr.f32.gmra.mrb[0].mxu0 %v621
        %v759 = vpop.f32.mrb[0].mxu0
        %v760 = vadd.f32 0.0, %v759
        %v761 = vpop.f32.mrb[0].mxu0
        %762 = vmatprep.mubr.f32.mxu0 0.0
        %763 = vmatmul.mubr.f32.gmra.mrb[0].mxu0 %v622
        %v764 = vpop.f32.mrb[0].mxu0
        %v765 = vadd.f32 0.0, %v764
        %v766 = vpop.f32.mrb[0].mxu0
        %767 = vmatprep.mubr.f32.mxu0 0.0
        %768 = vmatmul.mubr.f32.gmra.mrb[0].mxu0 %v623
        %v769 = vpop.f32.mrb[0].mxu0
        %v770 = vadd.f32 0.0, %v769
        %v771 = vpop.f32.mrb[0].mxu0
        %772 = vmatprep.mubr.f32.mxu0 0.0
        %773 = vmatmul.mubr.f32.gmra.mrb[0].mxu0 %v624
        %v774 = vpop.f32.mrb[0].mxu0
        %v775 = vadd.f32 0.0, %v774
        %v776 = vpop.f32.mrb[0].mxu0
        %777 = vmatprep.mubr.f32.mxu0 0.0
        %778 = vmatmul.mubr.f32.gmra.mrb[0].mxu0 %v625
        %v779 = vpop.f32.mrb[0].mxu0
        %v780 = vadd.f32 0.0, %v779
        %v781 = vpop.f32.mrb[0].mxu0
        %782 = vmatprep.mubr.f32.mxu0 0.0
        %783 = vmatmul.mubr.f32.gmra.mrb[0].mxu0 %v626
        %v784 = vpop.f32.mrb[0].mxu0
        %v785 = vadd.f32 0.0, %v784
        %v786 = vpop.f32.mrb[0].mxu0
        %787 = vdwg.mxu0
        %vm788 = vcmask 7168
        %v789 = vsel %vm788, %v710, -inf
        %v790 = vsel %vm788, %v715, -inf
        %v791 = vsel %vm788, %v720, -inf
        %v792 = vsel %vm788, %v725, -inf
        %v793 = vsel %vm788, %v730, -inf
        %v794 = vmax.f32 %v789, %v793
        %v795 = vsel %vm788, %v735, -inf
        %v796 = vmax.f32 %v790, %v795
        %v797 = vsel %vm788, %v740, -inf
        %v798 = vmax.f32 %v791, %v797
        %v799 = vsel %vm788, %v745, -inf
        %v800 = vmax.f32 %v792, %v799
        %v801 = vsel %vm788, %v750, -inf
        %v802 = vmax.f32 %v794, %v801
        %v803 = vsel %vm788, %v755, -inf
        %v804 = vmax.f32 %v796, %v803
        %v805 = vsel %vm788, %v760, -inf
        %v806 = vmax.f32 %v798, %v805
        %v807 = vsel %vm788, %v765, -inf
        %v808 = vmax.f32 %v800, %v807
        %v809 = vsel %vm788, %v770, -inf
        %v810 = vmax.f32 %v802, %v809
        %v811 = vsel %vm788, %v775, -inf
        %v812 = vmax.f32 %v804, %v811
        %v813 = vsel %vm788, %v780, -inf
        %v814 = vmax.f32 %v806, %v813
        %v815 = vsel %vm788, %v785, -inf
        %v816 = vmax.f32 %v808, %v815
        %v817 = vmax.f32 %v810, %v812
        %v818 = vmax.f32 %v814, %v816
        %v819 = vmax.f32 %v817, %v818
        %v820 = vrot.slane %v819, 4
        %v821 = vmax.f32 %v819, %v820
        %v822 = vrot.slane %v821, 2
        %v823 = vmax.f32 %v821, %v822
        %v824 = vrot.slane %v823, 1
        %v825 = vmax.f32 %v823, %v824
        %v826 = vsub.f32 %v710, %v825
        %v827 = vsub.f32 %v715, %v825
        %v828 = vsub.f32 %v720, %v825
        %v829 = vsub.f32 %v725, %v825
        %v830 = vsub.f32 %v730, %v825
        %v831 = vsub.f32 %v735, %v825
        %v832 = vsub.f32 %v740, %v825
        %v833 = vsub.f32 %v745, %v825
        %v834 = vsub.f32 %v750, %v825
        %v835 = vsub.f32 %v755, %v825
        %v836 = vsub.f32 %v760, %v825
        %v837 = vsub.f32 %v765, %v825
        %v838 = vsub.f32 %v770, %v825
        %v839 = vsub.f32 %v775, %v825
        %v840 = vsub.f32 %v780, %v825
        %v841 = vsub.f32 %v785, %v825
        %v842 = vmul.f32 %v826, 1.442695
        %v843 = vpow.pop %v842
        %v844 = vmul.f32 %v827, 1.442695
        %v845 = vpow.pop %v844
        %v846 = vmul.f32 %v828, 1.442695
        %v847 = vpow.pop %v846
        %v848 = vmul.f32 %v829, 1.442695
        %v849 = vpow.pop %v848
        %v850 = vmul.f32 %v830, 1.442695
        %v851 = vpow.pop %v850
        %v852 = vmul.f32 %v831, 1.442695
        %v853 = vpow.pop %v852
        %v854 = vmul.f32 %v832, 1.442695
        %v855 = vpow.pop %v854
        %v856 = vmul.f32 %v833, 1.442695
        %v857 = vpow.pop %v856
        %v858 = vmul.f32 %v834, 1.442695
        %v859 = vpow.pop %v858
        %v860 = vmul.f32 %v835, 1.442695
        %v861 = vpow.pop %v860
        %v862 = vmul.f32 %v836, 1.442695
        %v863 = vpow.pop %v862
        %v864 = vmul.f32 %v837, 1.442695
        %v865 = vpow.pop %v864
        %v866 = vmul.f32 %v838, 1.442695
        %v867 = vpow.pop %v866
        %v868 = vmul.f32 %v839, 1.442695
        %v869 = vpow.pop %v868
        %v870 = vmul.f32 %v840, 1.442695
        %v871 = vpow.pop %v870
        %v872 = vmul.f32 %v841, 1.442695
        %v873 = vpow.pop %v872
        %v874 = vsel %vm788, %v843, 0.0
        %v875 = vsel %vm788, %v845, 0.0
        %v876 = vadd.f32 %v874, %v875
        %v877 = vsel %vm788, %v847, 0.0
        %v878 = vadd.f32 %v876, %v877
        %v879 = vsel %vm788, %v849, 0.0
        %v880 = vadd.f32 %v878, %v879
        %v881 = vsel %vm788, %v851, 0.0
        %v882 = vadd.f32 %v880, %v881
        %v883 = vsel %vm788, %v853, 0.0
        %v884 = vadd.f32 %v882, %v883
        %v885 = vsel %vm788, %v855, 0.0
        %v886 = vadd.f32 %v884, %v885
        %v887 = vsel %vm788, %v857, 0.0
        %v888 = vadd.f32 %v886, %v887
        %v889 = vsel %vm788, %v859, 0.0
        %v890 = vadd.f32 %v888, %v889
        %v891 = vsel %vm788, %v861, 0.0
        %v892 = vadd.f32 %v890, %v891
        %v893 = vsel %vm788, %v863, 0.0
        %v894 = vadd.f32 %v892, %v893
        %v895 = vsel %vm788, %v865, 0.0
        %v896 = vadd.f32 %v894, %v895
        %v897 = vsel %vm788, %v867, 0.0
        %v898 = vadd.f32 %v896, %v897
        %v899 = vsel %vm788, %v869, 0.0
        %v900 = vadd.f32 %v898, %v899
        %v901 = vsel %vm788, %v871, 0.0
        %v902 = vadd.f32 %v900, %v901
        %v903 = vsel %vm788, %v873, 0.0
        %v904 = vadd.f32 %v902, %v903
        %v905 = vrot.slane %v904, 4
        %v906 = vadd.f32 %v904, %v905
        %v907 = vrot.slane %v906, 2
        %v908 = vadd.f32 %v906, %v907
        %v909 = vrot.slane %v908, 1
        %v910 = vadd.f32 %v908, %v909
        %v911 = vrcp.pop %v910
        %v912 = vmul.f32 %v843, %v911
        %v913 = vmul.f32 %v845, %v911
        %v914 = vmul.f32 %v847, %v911
        %v915 = vmul.f32 %v849, %v911
        %v916 = vmul.f32 %v851, %v911
        %v917 = vmul.f32 %v853, %v911
        %v918 = vmul.f32 %v855, %v911
        %v919 = vmul.f32 %v857, %v911
        %v920 = vmul.f32 %v859, %v911
        %v921 = vmul.f32 %v861, %v911
        %v922 = vmul.f32 %v863, %v911
        %v923 = vmul.f32 %v865, %v911
        %v924 = vmul.f32 %v867, %v911
        %v925 = vmul.f32 %v869, %v911
        %v926 = vmul.f32 %v871, %v911
        %v927 = vmul.f32 %v873, %v911
        %v928 = vld [vmem:[%s0] sm:$0xff]
        %v929 = vld [vmem:[%s0 + $0x8] sm:$0xff]
        %v930 = vld [vmem:[%s0 + $0x10] sm:$0xff]
        %v931 = vld [vmem:[%s0 + $0x18] sm:$0xff]
        %v932 = vld [vmem:[%s0 + $0x20] sm:$0xff]
        %v933 = vld [vmem:[%s0 + $0x28] sm:$0xff]
        %v934 = vld [vmem:[%s0 + $0x30] sm:$0xff]
        %v935 = vld [vmem:[%s0 + $0x38] sm:$0xff]
        %v936 = vld [vmem:[%s0 + $0x40] sm:$0xff]
        %v937 = vld [vmem:[%s0 + $0x48] sm:$0xff]
        %v938 = vld [vmem:[%s0 + $0x50] sm:$0xff]
        %v939 = vld [vmem:[%s0 + $0x58] sm:$0xff]
        %v940 = vld [vmem:[%s0 + $0x60] sm:$0xff]
        %v941 = vld [vmem:[%s0 + $0x68] sm:$0xff]
        %v942 = vld [vmem:[%s0 + $0x70] sm:$0xff]
        %v943 = vld [vmem:[%s0 + $0x78] sm:$0xff]
        %945 = vset.pattern.permute.xlu0 0
        %946 = vperm.xlu0 %945, %v912
        %v947 = vpop.permute.xlu0 %946
        %950 = vset.pattern.permute.xlu0 0
        %951 = vperm.xlu0 %950, %v913
        %v952 = vpop.permute.xlu0 %951
        %955 = vset.pattern.permute.xlu0 0
        %956 = vperm.xlu0 %955, %v914
        %v957 = vpop.permute.xlu0 %956
        %960 = vset.pattern.permute.xlu0 0
        %961 = vperm.xlu0 %960, %v915
        %v962 = vpop.permute.xlu0 %961
        %965 = vset.pattern.permute.xlu0 0
        %966 = vperm.xlu0 %965, %v916
        %v967 = vpop.permute.xlu0 %966
        %970 = vset.pattern.permute.xlu0 0
        %971 = vperm.xlu0 %970, %v917
        %v972 = vpop.permute.xlu0 %971
        %975 = vset.pattern.permute.xlu0 0
        %976 = vperm.xlu0 %975, %v918
        %v977 = vpop.permute.xlu0 %976
        %980 = vset.pattern.permute.xlu0 0
        %981 = vperm.xlu0 %980, %v919
        %v982 = vpop.permute.xlu0 %981
        %985 = vset.pattern.permute.xlu0 0
        %986 = vperm.xlu0 %985, %v920
        %v987 = vpop.permute.xlu0 %986
        %990 = vset.pattern.permute.xlu0 0
        %991 = vperm.xlu0 %990, %v921
        %v992 = vpop.permute.xlu0 %991
        %995 = vset.pattern.permute.xlu0 0
        %996 = vperm.xlu0 %995, %v922
        %v997 = vpop.permute.xlu0 %996
        %1000 = vset.pattern.permute.xlu0 0
        %1001 = vperm.xlu0 %1000, %v923
        %v1002 = vpop.permute.xlu0 %1001
        %1005 = vset.pattern.permute.xlu0 0
        %1006 = vperm.xlu0 %1005, %v924
        %v1007 = vpop.permute.xlu0 %1006
        %1010 = vset.pattern.permute.xlu0 0
        %1011 = vperm.xlu0 %1010, %v925
        %v1012 = vpop.permute.xlu0 %1011
        %1015 = vset.pattern.permute.xlu0 0
        %1016 = vperm.xlu0 %1015, %v926
        %v1017 = vpop.permute.xlu0 %1016
        %1020 = vset.pattern.permute.xlu0 0
        %1021 = vperm.xlu0 %1020, %v927
        %v1022 = vpop.permute.xlu0 %1021
        %v1024 = vmul.f32 %v947, %v928
        %v1025 = vmul.f32 %v952, %v929
        %v1026 = vmul.f32 %v957, %v930
        %v1027 = vmul.f32 %v962, %v931
        %v1028 = vmul.f32 %v967, %v932
        %v1029 = vmul.f32 %v972, %v933
        %v1030 = vmul.f32 %v977, %v934
        %v1031 = vmul.f32 %v982, %v935
        %v1032 = vmul.f32 %v987, %v936
        %v1033 = vmul.f32 %v992, %v937
        %v1034 = vmul.f32 %v997, %v938
        %v1035 = vmul.f32 %v1002, %v939
        %v1036 = vmul.f32 %v1007, %v940
        %v1037 = vmul.f32 %v1012, %v941
        %v1038 = vmul.f32 %v1017, %v942
        %v1039 = vmul.f32 %v1022, %v943
        %1040 = vst [vmem:[%s319] sm:$0xff] %v1024
        %1041 = vst [vmem:[%s319 + $0x8] sm:$0xff] %v1025
        %1042 = vst [vmem:[%s319 + $0x10] sm:$0xff] %v1026
        %1043 = vst [vmem:[%s319 + $0x18] sm:$0xff] %v1027
        %1044 = vst [vmem:[%s319 + $0x20] sm:$0xff] %v1028
        %1045 = vst [vmem:[%s319 + $0x28] sm:$0xff] %v1029
        %1046 = vst [vmem:[%s319 + $0x30] sm:$0xff] %v1030
        %1047 = vst [vmem:[%s319 + $0x38] sm:$0xff] %v1031
        %1048 = vst [vmem:[%s319 + $0x40] sm:$0xff] %v1032
        %1049 = vst [vmem:[%s319 + $0x48] sm:$0xff] %v1033
        %1050 = vst [vmem:[%s319 + $0x50] sm:$0xff] %v1034
        %1051 = vst [vmem:[%s319 + $0x58] sm:$0xff] %v1035
        %1052 = vst [vmem:[%s319 + $0x60] sm:$0xff] %v1036
        %1053 = vst [vmem:[%s319 + $0x68] sm:$0xff] %v1037
        %1054 = vst [vmem:[%s319 + $0x70] sm:$0xff] %v1038
        %1055 = vst [vmem:[%s319 + $0x78] sm:$0xff] %v1039
        %v1056 = vld [vmem:[%s6] sm:$0xff]
        %v1057 = vld [vmem:[%s6 + $0x8] sm:$0xff]
        %v1058 = vld [vmem:[%s6 + $0x10] sm:$0xff]
        %v1059 = vld [vmem:[%s6 + $0x18] sm:$0xff]
        %v1060 = vld [vmem:[%s6 + $0x20] sm:$0xff]
        %v1061 = vld [vmem:[%s6 + $0x28] sm:$0xff]
        %v1062 = vld [vmem:[%s6 + $0x30] sm:$0xff]
        %v1063 = vld [vmem:[%s6 + $0x38] sm:$0xff]
        %v1064 = vld [vmem:[%s6 + $0x40] sm:$0xff]
        %v1065 = vld [vmem:[%s6 + $0x48] sm:$0xff]
        %v1066 = vld [vmem:[%s6 + $0x50] sm:$0xff]
        %v1067 = vld [vmem:[%s6 + $0x58] sm:$0xff]
        %v1068 = vld [vmem:[%s6 + $0x60] sm:$0xff]
        %v1069 = vld [vmem:[%s6 + $0x68] sm:$0xff]
        %v1070 = vld [vmem:[%s6 + $0x70] sm:$0xff]
        %v1071 = vld [vmem:[%s6 + $0x78] sm:$0xff]
        %v1072 = vmul.f32 %v1056, %v947
        %v1073 = vmul.f32 %v1057, %v952
        %v1074 = vmul.f32 %v1058, %v957
        %v1075 = vmul.f32 %v1059, %v962
        %v1076 = vmul.f32 %v1060, %v967
        %v1077 = vmul.f32 %v1061, %v972
        %v1078 = vmul.f32 %v1062, %v977
        %v1079 = vmul.f32 %v1063, %v982
        %v1080 = vmul.f32 %v1064, %v987
        %v1081 = vmul.f32 %v1065, %v992
        %v1082 = vmul.f32 %v1066, %v997
        %v1083 = vmul.f32 %v1067, %v1002
        %v1084 = vmul.f32 %v1068, %v1007
        %v1085 = vmul.f32 %v1069, %v1012
        %v1086 = vmul.f32 %v1070, %v1017
        %v1087 = vmul.f32 %v1071, %v1022
        %v1088 = vadd.f32 %v1072, %v1073
        %v1089 = vadd.f32 %v1088, %v1074
        %v1090 = vadd.f32 %v1089, %v1075
        %v1091 = vadd.f32 %v1090, %v1076
        %v1092 = vadd.f32 %v1091, %v1077
        %v1093 = vadd.f32 %v1092, %v1078
        %v1094 = vadd.f32 %v1093, %v1079
        %v1095 = vadd.f32 %v1094, %v1080
        %v1096 = vadd.f32 %v1095, %v1081
        %v1097 = vadd.f32 %v1096, %v1082
        %v1098 = vadd.f32 %v1097, %v1083
        %v1099 = vadd.f32 %v1098, %v1084
        %v1100 = vadd.f32 %v1099, %v1085
        %v1101 = vadd.f32 %v1100, %v1086
        %v1102 = vadd.f32 %v1101, %v1087
        %v1103 = vrot.slane %v1102, 4
        %v1104 = vadd.f32 %v1102, %v1103
        %v1105 = vrot.slane %v1104, 2
        %v1106 = vadd.f32 %v1104, %v1105
        %v1107 = vrot.slane %v1106, 1
        %v1108 = vadd.f32 %v1106, %v1107
        %1109 = vst [vmem:[%s326] sm:$0x1] %v1108
        %s1110 = scalar_lea.vmem %s332, 128
        %v1111 = vld [vmem:[%s1110] sm:$0xff]
        %v1112 = vld [vmem:[%s1110 + $0x8] sm:$0xff]
        %v1113 = vld [vmem:[%s1110 + $0x10] sm:$0xff]
        %v1114 = vld [vmem:[%s1110 + $0x18] sm:$0xff]
        %v1115 = vld [vmem:[%s1110 + $0x20] sm:$0xff]
        %v1116 = vld [vmem:[%s1110 + $0x28] sm:$0xff]
        %v1117 = vld [vmem:[%s1110 + $0x30] sm:$0xff]
        %v1118 = vld [vmem:[%s1110 + $0x38] sm:$0xff]
        %v1119 = vld [vmem:[%s1110 + $0x40] sm:$0xff]
        %v1120 = vld [vmem:[%s1110 + $0x48] sm:$0xff]
        %v1121 = vld [vmem:[%s1110 + $0x50] sm:$0xff]
        %v1122 = vld [vmem:[%s1110 + $0x58] sm:$0xff]
        %v1123 = vld [vmem:[%s1110 + $0x60] sm:$0xff]
        %v1124 = vld [vmem:[%s1110 + $0x68] sm:$0xff]
        %v1125 = vld [vmem:[%s1110 + $0x70] sm:$0xff]
        %v1126 = vld [vmem:[%s1110 + $0x78] sm:$0xff]
        %v1127 = vld [vmem:[%s4] sm:$0x7]
        %v1129 = vsel %vm358, %v1111, 0
        %v1132 = vsel %vm358, %v1112, 0
        %v1135 = vsel %vm358, %v1113, 0
        %v1138 = vsel %vm358, %v1114, 0
        %v1141 = vsel %vm358, %v1115, 0
        %v1144 = vsel %vm358, %v1116, 0
        %v1147 = vsel %vm358, %v1117, 0
        %v1150 = vsel %vm358, %v1118, 0
        %v1153 = vsel %vm358, %v1119, 0
        %v1156 = vsel %vm358, %v1120, 0
        %v1159 = vsel %vm358, %v1121, 0
        %v1162 = vsel %vm358, %v1122, 0
        %v1165 = vsel %vm358, %v1123, 0
        %v1168 = vsel %vm358, %v1124, 0
        %v1171 = vsel %vm358, %v1125, 0
        %v1174 = vsel %vm358, %v1126, 0
        %v1177 = vsel %vm407, %v1127, 0
        %1179 = vmatprep.subr.mxu0 0.0
        %1180 = vmatpush1.msra.mxu0 %v1177
        %1181 = vmatprep.subr.mxu0 0.0
        %1182 = vmatpush1.msra.mxu0 0.0
        %1183 = vmatprep.subr.mxu0 0.0
        %1184 = vmatpush1.msra.mxu0 0.0
        %1185 = vmatprep.subr.mxu0 0.0
        %1186 = vmatpush1.msra.mxu0 0.0
        %1187 = vmatprep.subr.mxu0 0.0
        %1188 = vmatpush1.msra.mxu0 0.0
        %1189 = vmatprep.subr.mxu0 0.0
        %1190 = vmatpush1.msra.mxu0 0.0
        %1191 = vmatprep.subr.mxu0 0.0
        %1192 = vmatpush1.msra.mxu0 0.0
        %1193 = vmatprep.subr.mxu0 0.0
        %1194 = vmatpush1.msra.mxu0 0.0
        %1195 = vmatprep.subr.mxu0 0.0
        %1196 = vmatpush1.msra.mxu0 0.0
        %1197 = vmatprep.subr.mxu0 0.0
        %1198 = vmatpush1.msra.mxu0 0.0
        %1199 = vmatprep.subr.mxu0 0.0
        %1200 = vmatpush1.msra.mxu0 0.0
        %1201 = vmatprep.subr.mxu0 0.0
        %1202 = vmatpush1.msra.mxu0 0.0
        %1203 = vmatprep.subr.mxu0 0.0
        %1204 = vmatpush1.msra.mxu0 0.0
        %1205 = vmatprep.subr.mxu0 0.0
        %1206 = vmatpush1.msra.mxu0 0.0
        %1207 = vmatprep.subr.mxu0 0.0
        %1208 = vmatpush1.msra.mxu0 0.0
        %1209 = vmatprep.subr.mxu0 0.0
        %1210 = vmatpush1.msra.mxu0 0.0
        %1211 = vmatprep.subr.mxu0 0.0
        %1212 = vmatpush1.msra.mxu0 0.0
        %1213 = vmatprep.subr.mxu0 0.0
        %1214 = vmatpush1.msra.mxu0 0.0
        %1215 = vmatprep.subr.mxu0 0.0
        %1216 = vmatpush1.msra.mxu0 0.0
        %1217 = vmatprep.subr.mxu0 0.0
        %1218 = vmatpush1.msra.mxu0 0.0
        %1219 = vmatprep.subr.mxu0 0.0
        %1220 = vmatpush1.msra.mxu0 0.0
        %1221 = vmatprep.subr.mxu0 0.0
        %1222 = vmatpush1.msra.mxu0 0.0
        %1223 = vmatprep.subr.mxu0 0.0
        %1224 = vmatpush1.msra.mxu0 0.0
        %1225 = vmatprep.subr.mxu0 0.0
        %1226 = vmatpush1.msra.mxu0 0.0
        %1227 = vmatprep.subr.mxu0 0.0
        %1228 = vmatpush1.msra.mxu0 0.0
        %1229 = vmatprep.subr.mxu0 0.0
        %1230 = vmatpush1.msra.mxu0 0.0
        %1231 = vmatprep.subr.mxu0 0.0
        %1232 = vmatpush1.msra.mxu0 0.0
        %1233 = vmatprep.subr.mxu0 0.0
        %1234 = vmatpush1.msra.mxu0 0.0
        %1235 = vmatprep.subr.mxu0 0.0
        %1236 = vmatpush1.msra.mxu0 0.0
        %1237 = vmatprep.subr.mxu0 0.0
        %1238 = vmatpush1.msra.mxu0 0.0
        %1239 = vmatprep.subr.mxu0 0.0
        %1240 = vmatpush1.msra.mxu0 0.0
        %1241 = vmatprep.subr.mxu0 0.0
        %1242 = vmatpush1.msra.mxu0 0.0
        %1243 = vmatprep.mubr.f32.mxu0 0.0
        %1244 = vmatmul.mubr.f32.gmra.mrb[0].mxu0 %v1129
        %v1245 = vpop.f32.mrb[0].mxu0
        %v1246 = vadd.f32 0.0, %v1245
        %v1247 = vpop.f32.mrb[0].mxu0
        %1248 = vmatprep.mubr.f32.mxu0 0.0
        %1249 = vmatmul.mubr.f32.gmra.mrb[0].mxu0 %v1132
        %v1250 = vpop.f32.mrb[0].mxu0
        %v1251 = vadd.f32 0.0, %v1250
        %v1252 = vpop.f32.mrb[0].mxu0
        %1253 = vmatprep.mubr.f32.mxu0 0.0
        %1254 = vmatmul.mubr.f32.gmra.mrb[0].mxu0 %v1135
        %v1255 = vpop.f32.mrb[0].mxu0
        %v1256 = vadd.f32 0.0, %v1255
        %v1257 = vpop.f32.mrb[0].mxu0
        %1258 = vmatprep.mubr.f32.mxu0 0.0
        %1259 = vmatmul.mubr.f32.gmra.mrb[0].mxu0 %v1138
        %v1260 = vpop.f32.mrb[0].mxu0
        %v1261 = vadd.f32 0.0, %v1260
        %v1262 = vpop.f32.mrb[0].mxu0
        %1263 = vmatprep.mubr.f32.mxu0 0.0
        %1264 = vmatmul.mubr.f32.gmra.mrb[0].mxu0 %v1141
        %v1265 = vpop.f32.mrb[0].mxu0
        %v1266 = vadd.f32 0.0, %v1265
        %v1267 = vpop.f32.mrb[0].mxu0
        %1268 = vmatprep.mubr.f32.mxu0 0.0
        %1269 = vmatmul.mubr.f32.gmra.mrb[0].mxu0 %v1144
        %v1270 = vpop.f32.mrb[0].mxu0
        %v1271 = vadd.f32 0.0, %v1270
        %v1272 = vpop.f32.mrb[0].mxu0
        %1273 = vmatprep.mubr.f32.mxu0 0.0
        %1274 = vmatmul.mubr.f32.gmra.mrb[0].mxu0 %v1147
        %v1275 = vpop.f32.mrb[0].mxu0
        %v1276 = vadd.f32 0.0, %v1275
        %v1277 = vpop.f32.mrb[0].mxu0
        %1278 = vmatprep.mubr.f32.mxu0 0.0
        %1279 = vmatmul.mubr.f32.gmra.mrb[0].mxu0 %v1150
        %v1280 = vpop.f32.mrb[0].mxu0
        %v1281 = vadd.f32 0.0, %v1280
        %v1282 = vpop.f32.mrb[0].mxu0
        %1283 = vmatprep.mubr.f32.mxu0 0.0
        %1284 = vmatmul.mubr.f32.gmra.mrb[0].mxu0 %v1153
        %v1285 = vpop.f32.mrb[0].mxu0
        %v1286 = vadd.f32 0.0, %v1285
        %v1287 = vpop.f32.mrb[0].mxu0
        %1288 = vmatprep.mubr.f32.mxu0 0.0
        %1289 = vmatmul.mubr.f32.gmra.mrb[0].mxu0 %v1156
        %v1290 = vpop.f32.mrb[0].mxu0
        %v1291 = vadd.f32 0.0, %v1290
        %v1292 = vpop.f32.mrb[0].mxu0
        %1293 = vmatprep.mubr.f32.mxu0 0.0
        %1294 = vmatmul.mubr.f32.gmra.mrb[0].mxu0 %v1159
        %v1295 = vpop.f32.mrb[0].mxu0
        %v1296 = vadd.f32 0.0, %v1295
        %v1297 = vpop.f32.mrb[0].mxu0
        %1298 = vmatprep.mubr.f32.mxu0 0.0
        %1299 = vmatmul.mubr.f32.gmra.mrb[0].mxu0 %v1162
        %v1300 = vpop.f32.mrb[0].mxu0
        %v1301 = vadd.f32 0.0, %v1300
        %v1302 = vpop.f32.mrb[0].mxu0
        %1303 = vmatprep.mubr.f32.mxu0 0.0
        %1304 = vmatmul.mubr.f32.gmra.mrb[0].mxu0 %v1165
        %v1305 = vpop.f32.mrb[0].mxu0
        %v1306 = vadd.f32 0.0, %v1305
        %v1307 = vpop.f32.mrb[0].mxu0
        %1308 = vmatprep.mubr.f32.mxu0 0.0
        %1309 = vmatmul.mubr.f32.gmra.mrb[0].mxu0 %v1168
        %v1310 = vpop.f32.mrb[0].mxu0
        %v1311 = vadd.f32 0.0, %v1310
        %v1312 = vpop.f32.mrb[0].mxu0
        %1313 = vmatprep.mubr.f32.mxu0 0.0
        %1314 = vmatmul.mubr.f32.gmra.mrb[0].mxu0 %v1171
        %v1315 = vpop.f32.mrb[0].mxu0
        %v1316 = vadd.f32 0.0, %v1315
        %v1317 = vpop.f32.mrb[0].mxu0
        %1318 = vmatprep.mubr.f32.mxu0 0.0
        %1319 = vmatmul.mubr.f32.gmra.mrb[0].mxu0 %v1174
        %v1320 = vpop.f32.mrb[0].mxu0
        %v1321 = vadd.f32 0.0, %v1320
        %v1322 = vpop.f32.mrb[0].mxu0
        %1323 = vdwg.mxu0
        %v1324 = vld [vmem:[%s1] sm:$0xff]
        %v1325 = vld [vmem:[%s1 + $0x8] sm:$0xff]
        %v1326 = vld [vmem:[%s1 + $0x10] sm:$0xff]
        %v1327 = vld [vmem:[%s1 + $0x18] sm:$0xff]
        %v1328 = vld [vmem:[%s1 + $0x20] sm:$0xff]
        %v1329 = vld [vmem:[%s1 + $0x28] sm:$0xff]
        %v1330 = vld [vmem:[%s1 + $0x30] sm:$0xff]
        %v1331 = vld [vmem:[%s1 + $0x38] sm:$0xff]
        %v1332 = vld [vmem:[%s1 + $0x40] sm:$0xff]
        %v1333 = vld [vmem:[%s1 + $0x48] sm:$0xff]
        %v1334 = vld [vmem:[%s1 + $0x50] sm:$0xff]
        %v1335 = vld [vmem:[%s1 + $0x58] sm:$0xff]
        %v1336 = vld [vmem:[%s1 + $0x60] sm:$0xff]
        %v1337 = vld [vmem:[%s1 + $0x68] sm:$0xff]
        %v1338 = vld [vmem:[%s1 + $0x70] sm:$0xff]
        %v1339 = vld [vmem:[%s1 + $0x78] sm:$0xff]
        %v1340 = vadd.f32 %v1324, %v1246
        %v1341 = vadd.f32 %v1325, %v1251
        %v1342 = vadd.f32 %v1326, %v1256
        %v1343 = vadd.f32 %v1327, %v1261
        %v1344 = vadd.f32 %v1328, %v1266
        %v1345 = vadd.f32 %v1329, %v1271
        %v1346 = vadd.f32 %v1330, %v1276
        %v1347 = vadd.f32 %v1331, %v1281
        %v1348 = vadd.f32 %v1332, %v1286
        %v1349 = vadd.f32 %v1333, %v1291
        %v1350 = vadd.f32 %v1334, %v1296
        %v1351 = vadd.f32 %v1335, %v1301
        %v1352 = vadd.f32 %v1336, %v1306
        %v1353 = vadd.f32 %v1337, %v1311
        %v1354 = vadd.f32 %v1338, %v1316
        %v1355 = vadd.f32 %v1339, %v1321
        %s1356 = scalar_lea.vmem %s337, 1
        %v1357 = vld [vmem:[%s1356] sm:$0x1]
        %v1359 = vlaneseq
        %v1360 = vshrl.u32 %v1359, 7
        %v1361 = vsub.s32 0, %v1360
        %v1362 = vrot.slane %v1357, %v1361
        %v1364 = vadd.f32 %v1340, %v1362
        %v1365 = vadd.f32 %v1341, %v1362
        %v1366 = vadd.f32 %v1342, %v1362
        %v1367 = vadd.f32 %v1343, %v1362
        %v1368 = vadd.f32 %v1344, %v1362
        %v1369 = vadd.f32 %v1345, %v1362
        %v1370 = vadd.f32 %v1346, %v1362
        %v1371 = vadd.f32 %v1347, %v1362
        %v1372 = vadd.f32 %v1348, %v1362
        %v1373 = vadd.f32 %v1349, %v1362
        %v1374 = vadd.f32 %v1350, %v1362
        %v1375 = vadd.f32 %v1351, %v1362
        %v1376 = vadd.f32 %v1352, %v1362
        %v1377 = vadd.f32 %v1353, %v1362
        %v1378 = vadd.f32 %v1354, %v1362
        %v1379 = vadd.f32 %v1355, %v1362
        %v1380 = vmax.f32 %v1364, 0.0
        %v1381 = vmax.f32 %v1365, 0.0
        %v1382 = vmax.f32 %v1366, 0.0
        %v1383 = vmax.f32 %v1367, 0.0
        %v1384 = vmax.f32 %v1368, 0.0
        %v1385 = vmax.f32 %v1369, 0.0
        %v1386 = vmax.f32 %v1370, 0.0
        %v1387 = vmax.f32 %v1371, 0.0
        %v1388 = vmax.f32 %v1372, 0.0
        %v1389 = vmax.f32 %v1373, 0.0
        %v1390 = vmax.f32 %v1374, 0.0
        %v1391 = vmax.f32 %v1375, 0.0
        %v1392 = vmax.f32 %v1376, 0.0
        %v1393 = vmax.f32 %v1377, 0.0
        %v1394 = vmax.f32 %v1378, 0.0
        %v1395 = vmax.f32 %v1379, 0.0
        %v1396 = vld [vmem:[%s5] sm:$0xff]
        %v1397 = vld [vmem:[%s5 + $0x8] sm:$0xff]
        %v1398 = vld [vmem:[%s5 + $0x10] sm:$0xff]
        %v1399 = vld [vmem:[%s5 + $0x18] sm:$0xff]
        %v1400 = vld [vmem:[%s5 + $0x20] sm:$0xff]
        %v1401 = vld [vmem:[%s5 + $0x28] sm:$0xff]
        %v1402 = vld [vmem:[%s5 + $0x30] sm:$0xff]
        %v1403 = vld [vmem:[%s5 + $0x38] sm:$0xff]
        %v1404 = vld [vmem:[%s5 + $0x40] sm:$0xff]
        %v1405 = vld [vmem:[%s5 + $0x48] sm:$0xff]
        %v1406 = vld [vmem:[%s5 + $0x50] sm:$0xff]
        %v1407 = vld [vmem:[%s5 + $0x58] sm:$0xff]
        %v1408 = vld [vmem:[%s5 + $0x60] sm:$0xff]
        %v1409 = vld [vmem:[%s5 + $0x68] sm:$0xff]
        %v1410 = vld [vmem:[%s5 + $0x70] sm:$0xff]
        %v1411 = vld [vmem:[%s5 + $0x78] sm:$0xff]
        %1412 = vmatprep.subr.mxu0 0.0
        %1413 = vmatpush1.msra.mxu0 %v1396
        %1414 = vmatprep.subr.mxu0 0.0
        %1415 = vmatpush1.msra.mxu0 %v1397
        %1416 = vmatprep.subr.mxu0 0.0
        %1417 = vmatpush1.msra.mxu0 %v1398
        %1418 = vmatprep.subr.mxu0 0.0
        %1419 = vmatpush1.msra.mxu0 %v1399
        %1420 = vmatprep.subr.mxu0 0.0
        %1421 = vmatpush1.msra.mxu0 %v1400
        %1422 = vmatprep.subr.mxu0 0.0
        %1423 = vmatpush1.msra.mxu0 %v1401
        %1424 = vmatprep.subr.mxu0 0.0
        %1425 = vmatpush1.msra.mxu0 %v1402
        %1426 = vmatprep.subr.mxu0 0.0
        %1427 = vmatpush1.msra.mxu0 %v1403
        %1428 = vmatprep.subr.mxu0 0.0
        %1429 = vmatpush1.msra.mxu0 %v1404
        %1430 = vmatprep.subr.mxu0 0.0
        %1431 = vmatpush1.msra.mxu0 %v1405
        %1432 = vmatprep.subr.mxu0 0.0
        %1433 = vmatpush1.msra.mxu0 %v1406
        %1434 = vmatprep.subr.mxu0 0.0
        %1435 = vmatpush1.msra.mxu0 %v1407
        %1436 = vmatprep.subr.mxu0 0.0
        %1437 = vmatpush1.msra.mxu0 %v1408
        %1438 = vmatprep.subr.mxu0 0.0
        %1439 = vmatpush1.msra.mxu0 %v1409
        %1440 = vmatprep.subr.mxu0 0.0
        %1441 = vmatpush1.msra.mxu0 %v1410
        %1442 = vmatprep.subr.mxu0 0.0
        %1443 = vmatpush1.msra.mxu0 %v1411
        %1444 = vmatprep.subr.mxu0 0.0
        %1445 = vmatpush1.msra.mxu0 0.0
        %1446 = vmatprep.subr.mxu0 0.0
        %1447 = vmatpush1.msra.mxu0 0.0
        %1448 = vmatprep.subr.mxu0 0.0
        %1449 = vmatpush1.msra.mxu0 0.0
        %1450 = vmatprep.subr.mxu0 0.0
        %1451 = vmatpush1.msra.mxu0 0.0
        %1452 = vmatprep.subr.mxu0 0.0
        %1453 = vmatpush1.msra.mxu0 0.0
        %1454 = vmatprep.subr.mxu0 0.0
        %1455 = vmatpush1.msra.mxu0 0.0
        %1456 = vmatprep.subr.mxu0 0.0
        %1457 = vmatpush1.msra.mxu0 0.0
        %1458 = vmatprep.subr.mxu0 0.0
        %1459 = vmatpush1.msra.mxu0 0.0
        %1460 = vmatprep.subr.mxu0 0.0
        %1461 = vmatpush1.msra.mxu0 0.0
        %1462 = vmatprep.subr.mxu0 0.0
        %1463 = vmatpush1.msra.mxu0 0.0
        %1464 = vmatprep.subr.mxu0 0.0
        %1465 = vmatpush1.msra.mxu0 0.0
        %1466 = vmatprep.subr.mxu0 0.0
        %1467 = vmatpush1.msra.mxu0 0.0
        %1468 = vmatprep.subr.mxu0 0.0
        %1469 = vmatpush1.msra.mxu0 0.0
        %1470 = vmatprep.subr.mxu0 0.0
        %1471 = vmatpush1.msra.mxu0 0.0
        %1472 = vmatprep.subr.mxu0 0.0
        %1473 = vmatpush1.msra.mxu0 0.0
        %1474 = vmatprep.subr.mxu0 0.0
        %1475 = vmatpush1.msra.mxu0 0.0
        %1476 = vmatprep.mubr.f32.mxu0 0.0
        %1477 = vmatmul.mubr.f32.gmra.mrb[0].mxu0 %v1380
        %v1478 = vpop.f32.mrb[0].mxu0
        %v1479 = vadd.f32 0.0, %v1478
        %v1480 = vpop.f32.mrb[0].mxu0
        %1481 = vmatprep.mubr.f32.mxu0 0.0
        %1482 = vmatmul.mubr.f32.gmra.mrb[0].mxu0 %v1381
        %v1483 = vpop.f32.mrb[0].mxu0
        %v1484 = vadd.f32 0.0, %v1483
        %v1485 = vpop.f32.mrb[0].mxu0
        %1486 = vmatprep.mubr.f32.mxu0 0.0
        %1487 = vmatmul.mubr.f32.gmra.mrb[0].mxu0 %v1382
        %v1488 = vpop.f32.mrb[0].mxu0
        %v1489 = vadd.f32 0.0, %v1488
        %v1490 = vpop.f32.mrb[0].mxu0
        %1491 = vmatprep.mubr.f32.mxu0 0.0
        %1492 = vmatmul.mubr.f32.gmra.mrb[0].mxu0 %v1383
        %v1493 = vpop.f32.mrb[0].mxu0
        %v1494 = vadd.f32 0.0, %v1493
        %v1495 = vpop.f32.mrb[0].mxu0
        %1496 = vmatprep.mubr.f32.mxu0 0.0
        %1497 = vmatmul.mubr.f32.gmra.mrb[0].mxu0 %v1384
        %v1498 = vpop.f32.mrb[0].mxu0
        %v1499 = vadd.f32 0.0, %v1498
        %v1500 = vpop.f32.mrb[0].mxu0
        %1501 = vmatprep.mubr.f32.mxu0 0.0
        %1502 = vmatmul.mubr.f32.gmra.mrb[0].mxu0 %v1385
        %v1503 = vpop.f32.mrb[0].mxu0
        %v1504 = vadd.f32 0.0, %v1503
        %v1505 = vpop.f32.mrb[0].mxu0
        %1506 = vmatprep.mubr.f32.mxu0 0.0
        %1507 = vmatmul.mubr.f32.gmra.mrb[0].mxu0 %v1386
        %v1508 = vpop.f32.mrb[0].mxu0
        %v1509 = vadd.f32 0.0, %v1508
        %v1510 = vpop.f32.mrb[0].mxu0
        %1511 = vmatprep.mubr.f32.mxu0 0.0
        %1512 = vmatmul.mubr.f32.gmra.mrb[0].mxu0 %v1387
        %v1513 = vpop.f32.mrb[0].mxu0
        %v1514 = vadd.f32 0.0, %v1513
        %v1515 = vpop.f32.mrb[0].mxu0
        %1516 = vmatprep.mubr.f32.mxu0 0.0
        %1517 = vmatmul.mubr.f32.gmra.mrb[0].mxu0 %v1388
        %v1518 = vpop.f32.mrb[0].mxu0
        %v1519 = vadd.f32 0.0, %v1518
        %v1520 = vpop.f32.mrb[0].mxu0
        %1521 = vmatprep.mubr.f32.mxu0 0.0
        %1522 = vmatmul.mubr.f32.gmra.mrb[0].mxu0 %v1389
        %v1523 = vpop.f32.mrb[0].mxu0
        %v1524 = vadd.f32 0.0, %v1523
        %v1525 = vpop.f32.mrb[0].mxu0
        %1526 = vmatprep.mubr.f32.mxu0 0.0
        %1527 = vmatmul.mubr.f32.gmra.mrb[0].mxu0 %v1390
        %v1528 = vpop.f32.mrb[0].mxu0
        %v1529 = vadd.f32 0.0, %v1528
        %v1530 = vpop.f32.mrb[0].mxu0
        %1531 = vmatprep.mubr.f32.mxu0 0.0
        %1532 = vmatmul.mubr.f32.gmra.mrb[0].mxu0 %v1391
        %v1533 = vpop.f32.mrb[0].mxu0
        %v1534 = vadd.f32 0.0, %v1533
        %v1535 = vpop.f32.mrb[0].mxu0
        %1536 = vmatprep.mubr.f32.mxu0 0.0
        %1537 = vmatmul.mubr.f32.gmra.mrb[0].mxu0 %v1392
        %v1538 = vpop.f32.mrb[0].mxu0
        %v1539 = vadd.f32 0.0, %v1538
        %v1540 = vpop.f32.mrb[0].mxu0
        %1541 = vmatprep.mubr.f32.mxu0 0.0
        %1542 = vmatmul.mubr.f32.gmra.mrb[0].mxu0 %v1393
        %v1543 = vpop.f32.mrb[0].mxu0
        %v1544 = vadd.f32 0.0, %v1543
        %v1545 = vpop.f32.mrb[0].mxu0
        %1546 = vmatprep.mubr.f32.mxu0 0.0
        %1547 = vmatmul.mubr.f32.gmra.mrb[0].mxu0 %v1394
        %v1548 = vpop.f32.mrb[0].mxu0
        %v1549 = vadd.f32 0.0, %v1548
        %v1550 = vpop.f32.mrb[0].mxu0
        %1551 = vmatprep.mubr.f32.mxu0 0.0
        %1552 = vmatmul.mubr.f32.gmra.mrb[0].mxu0 %v1395
        %v1553 = vpop.f32.mrb[0].mxu0
        %v1554 = vadd.f32 0.0, %v1553
        %v1555 = vpop.f32.mrb[0].mxu0
        %1556 = vdwg.mxu0
        %v1557 = vsel %vm788, %v1479, -inf
        %v1558 = vsel %vm788, %v1484, -inf
        %v1559 = vsel %vm788, %v1489, -inf
        %v1560 = vsel %vm788, %v1494, -inf
        %v1561 = vsel %vm788, %v1499, -inf
        %v1562 = vmax.f32 %v1557, %v1561
        %v1563 = vsel %vm788, %v1504, -inf
        %v1564 = vmax.f32 %v1558, %v1563
        %v1565 = vsel %vm788, %v1509, -inf
        %v1566 = vmax.f32 %v1559, %v1565
        %v1567 = vsel %vm788, %v1514, -inf
        %v1568 = vmax.f32 %v1560, %v1567
        %v1569 = vsel %vm788, %v1519, -inf
        %v1570 = vmax.f32 %v1562, %v1569
        %v1571 = vsel %vm788, %v1524, -inf
        %v1572 = vmax.f32 %v1564, %v1571
        %v1573 = vsel %vm788, %v1529, -inf
        %v1574 = vmax.f32 %v1566, %v1573
        %v1575 = vsel %vm788, %v1534, -inf
        %v1576 = vmax.f32 %v1568, %v1575
        %v1577 = vsel %vm788, %v1539, -inf
        %v1578 = vmax.f32 %v1570, %v1577
        %v1579 = vsel %vm788, %v1544, -inf
        %v1580 = vmax.f32 %v1572, %v1579
        %v1581 = vsel %vm788, %v1549, -inf
        %v1582 = vmax.f32 %v1574, %v1581
        %v1583 = vsel %vm788, %v1554, -inf
        %v1584 = vmax.f32 %v1576, %v1583
        %v1585 = vmax.f32 %v1578, %v1580
        %v1586 = vmax.f32 %v1582, %v1584
        %v1587 = vmax.f32 %v1585, %v1586
        %v1588 = vrot.slane %v1587, 4
        %v1589 = vmax.f32 %v1587, %v1588
        %v1590 = vrot.slane %v1589, 2
        %v1591 = vmax.f32 %v1589, %v1590
        %v1592 = vrot.slane %v1591, 1
        %v1593 = vmax.f32 %v1591, %v1592
        %v1594 = vsub.f32 %v1479, %v1593
        %v1595 = vsub.f32 %v1484, %v1593
        %v1596 = vsub.f32 %v1489, %v1593
        %v1597 = vsub.f32 %v1494, %v1593
        %v1598 = vsub.f32 %v1499, %v1593
        %v1599 = vsub.f32 %v1504, %v1593
        %v1600 = vsub.f32 %v1509, %v1593
        %v1601 = vsub.f32 %v1514, %v1593
        %v1602 = vsub.f32 %v1519, %v1593
        %v1603 = vsub.f32 %v1524, %v1593
        %v1604 = vsub.f32 %v1529, %v1593
        %v1605 = vsub.f32 %v1534, %v1593
        %v1606 = vsub.f32 %v1539, %v1593
        %v1607 = vsub.f32 %v1544, %v1593
        %v1608 = vsub.f32 %v1549, %v1593
        %v1609 = vsub.f32 %v1554, %v1593
        %v1610 = vmul.f32 %v1594, 1.442695
        %v1611 = vpow.pop %v1610
        %v1612 = vmul.f32 %v1595, 1.442695
        %v1613 = vpow.pop %v1612
        %v1614 = vmul.f32 %v1596, 1.442695
        %v1615 = vpow.pop %v1614
        %v1616 = vmul.f32 %v1597, 1.442695
        %v1617 = vpow.pop %v1616
        %v1618 = vmul.f32 %v1598, 1.442695
        %v1619 = vpow.pop %v1618
        %v1620 = vmul.f32 %v1599, 1.442695
        %v1621 = vpow.pop %v1620
        %v1622 = vmul.f32 %v1600, 1.442695
        %v1623 = vpow.pop %v1622
        %v1624 = vmul.f32 %v1601, 1.442695
        %v1625 = vpow.pop %v1624
        %v1626 = vmul.f32 %v1602, 1.442695
        %v1627 = vpow.pop %v1626
        %v1628 = vmul.f32 %v1603, 1.442695
        %v1629 = vpow.pop %v1628
        %v1630 = vmul.f32 %v1604, 1.442695
        %v1631 = vpow.pop %v1630
        %v1632 = vmul.f32 %v1605, 1.442695
        %v1633 = vpow.pop %v1632
        %v1634 = vmul.f32 %v1606, 1.442695
        %v1635 = vpow.pop %v1634
        %v1636 = vmul.f32 %v1607, 1.442695
        %v1637 = vpow.pop %v1636
        %v1638 = vmul.f32 %v1608, 1.442695
        %v1639 = vpow.pop %v1638
        %v1640 = vmul.f32 %v1609, 1.442695
        %v1641 = vpow.pop %v1640
        %v1642 = vsel %vm788, %v1611, 0.0
        %v1643 = vsel %vm788, %v1613, 0.0
        %v1644 = vadd.f32 %v1642, %v1643
        %v1645 = vsel %vm788, %v1615, 0.0
        %v1646 = vadd.f32 %v1644, %v1645
        %v1647 = vsel %vm788, %v1617, 0.0
        %v1648 = vadd.f32 %v1646, %v1647
        %v1649 = vsel %vm788, %v1619, 0.0
        %v1650 = vadd.f32 %v1648, %v1649
        %v1651 = vsel %vm788, %v1621, 0.0
        %v1652 = vadd.f32 %v1650, %v1651
        %v1653 = vsel %vm788, %v1623, 0.0
        %v1654 = vadd.f32 %v1652, %v1653
        %v1655 = vsel %vm788, %v1625, 0.0
        %v1656 = vadd.f32 %v1654, %v1655
        %v1657 = vsel %vm788, %v1627, 0.0
        %v1658 = vadd.f32 %v1656, %v1657
        %v1659 = vsel %vm788, %v1629, 0.0
        %v1660 = vadd.f32 %v1658, %v1659
        %v1661 = vsel %vm788, %v1631, 0.0
        %v1662 = vadd.f32 %v1660, %v1661
        %v1663 = vsel %vm788, %v1633, 0.0
        %v1664 = vadd.f32 %v1662, %v1663
        %v1665 = vsel %vm788, %v1635, 0.0
        %v1666 = vadd.f32 %v1664, %v1665
        %v1667 = vsel %vm788, %v1637, 0.0
        %v1668 = vadd.f32 %v1666, %v1667
        %v1669 = vsel %vm788, %v1639, 0.0
        %v1670 = vadd.f32 %v1668, %v1669
        %v1671 = vsel %vm788, %v1641, 0.0
        %v1672 = vadd.f32 %v1670, %v1671
        %v1673 = vrot.slane %v1672, 4
        %v1674 = vadd.f32 %v1672, %v1673
        %v1675 = vrot.slane %v1674, 2
        %v1676 = vadd.f32 %v1674, %v1675
        %v1677 = vrot.slane %v1676, 1
        %v1678 = vadd.f32 %v1676, %v1677
        %v1679 = vrcp.pop %v1678
        %v1680 = vmul.f32 %v1611, %v1679
        %v1681 = vmul.f32 %v1613, %v1679
        %v1682 = vmul.f32 %v1615, %v1679
        %v1683 = vmul.f32 %v1617, %v1679
        %v1684 = vmul.f32 %v1619, %v1679
        %v1685 = vmul.f32 %v1621, %v1679
        %v1686 = vmul.f32 %v1623, %v1679
        %v1687 = vmul.f32 %v1625, %v1679
        %v1688 = vmul.f32 %v1627, %v1679
        %v1689 = vmul.f32 %v1629, %v1679
        %v1690 = vmul.f32 %v1631, %v1679
        %v1691 = vmul.f32 %v1633, %v1679
        %v1692 = vmul.f32 %v1635, %v1679
        %v1693 = vmul.f32 %v1637, %v1679
        %v1694 = vmul.f32 %v1639, %v1679
        %v1695 = vmul.f32 %v1641, %v1679
        %v1696 = vld [vmem:[%s0] sm:$0xff]
        %v1697 = vld [vmem:[%s0 + $0x8] sm:$0xff]
        %v1698 = vld [vmem:[%s0 + $0x10] sm:$0xff]
        %v1699 = vld [vmem:[%s0 + $0x18] sm:$0xff]
        %v1700 = vld [vmem:[%s0 + $0x20] sm:$0xff]
        %v1701 = vld [vmem:[%s0 + $0x28] sm:$0xff]
        %v1702 = vld [vmem:[%s0 + $0x30] sm:$0xff]
        %v1703 = vld [vmem:[%s0 + $0x38] sm:$0xff]
        %v1704 = vld [vmem:[%s0 + $0x40] sm:$0xff]
        %v1705 = vld [vmem:[%s0 + $0x48] sm:$0xff]
        %v1706 = vld [vmem:[%s0 + $0x50] sm:$0xff]
        %v1707 = vld [vmem:[%s0 + $0x58] sm:$0xff]
        %v1708 = vld [vmem:[%s0 + $0x60] sm:$0xff]
        %v1709 = vld [vmem:[%s0 + $0x68] sm:$0xff]
        %v1710 = vld [vmem:[%s0 + $0x70] sm:$0xff]
        %v1711 = vld [vmem:[%s0 + $0x78] sm:$0xff]
        %1713 = vset.pattern.permute.xlu0 0
        %1714 = vperm.xlu0 %1713, %v1680
        %v1715 = vpop.permute.xlu0 %1714
        %1718 = vset.pattern.permute.xlu0 0
        %1719 = vperm.xlu0 %1718, %v1681
        %v1720 = vpop.permute.xlu0 %1719
        %1723 = vset.pattern.permute.xlu0 0
        %1724 = vperm.xlu0 %1723, %v1682
        %v1725 = vpop.permute.xlu0 %1724
        %1728 = vset.pattern.permute.xlu0 0
        %1729 = vperm.xlu0 %1728, %v1683
        %v1730 = vpop.permute.xlu0 %1729
        %1733 = vset.pattern.permute.xlu0 0
        %1734 = vperm.xlu0 %1733, %v1684
        %v1735 = vpop.permute.xlu0 %1734
        %1738 = vset.pattern.permute.xlu0 0
        %1739 = vperm.xlu0 %1738, %v1685
        %v1740 = vpop.permute.xlu0 %1739
        %1743 = vset.pattern.permute.xlu0 0
        %1744 = vperm.xlu0 %1743, %v1686
        %v1745 = vpop.permute.xlu0 %1744
        %1748 = vset.pattern.permute.xlu0 0
        %1749 = vperm.xlu0 %1748, %v1687
        %v1750 = vpop.permute.xlu0 %1749
        %1753 = vset.pattern.permute.xlu0 0
        %1754 = vperm.xlu0 %1753, %v1688
        %v1755 = vpop.permute.xlu0 %1754
        %1758 = vset.pattern.permute.xlu0 0
        %1759 = vperm.xlu0 %1758, %v1689
        %v1760 = vpop.permute.xlu0 %1759
        %1763 = vset.pattern.permute.xlu0 0
        %1764 = vperm.xlu0 %1763, %v1690
        %v1765 = vpop.permute.xlu0 %1764
        %1768 = vset.pattern.permute.xlu0 0
        %1769 = vperm.xlu0 %1768, %v1691
        %v1770 = vpop.permute.xlu0 %1769
        %1773 = vset.pattern.permute.xlu0 0
        %1774 = vperm.xlu0 %1773, %v1692
        %v1775 = vpop.permute.xlu0 %1774
        %1778 = vset.pattern.permute.xlu0 0
        %1779 = vperm.xlu0 %1778, %v1693
        %v1780 = vpop.permute.xlu0 %1779
        %1783 = vset.pattern.permute.xlu0 0
        %1784 = vperm.xlu0 %1783, %v1694
        %v1785 = vpop.permute.xlu0 %1784
        %1788 = vset.pattern.permute.xlu0 0
        %1789 = vperm.xlu0 %1788, %v1695
        %v1790 = vpop.permute.xlu0 %1789
        %v1792 = vmul.f32 %v1715, %v1696
        %v1793 = vmul.f32 %v1720, %v1697
        %v1794 = vmul.f32 %v1725, %v1698
        %v1795 = vmul.f32 %v1730, %v1699
        %v1796 = vmul.f32 %v1735, %v1700
        %v1797 = vmul.f32 %v1740, %v1701
        %v1798 = vmul.f32 %v1745, %v1702
        %v1799 = vmul.f32 %v1750, %v1703
        %v1800 = vmul.f32 %v1755, %v1704
        %v1801 = vmul.f32 %v1760, %v1705
        %v1802 = vmul.f32 %v1765, %v1706
        %v1803 = vmul.f32 %v1770, %v1707
        %v1804 = vmul.f32 %v1775, %v1708
        %v1805 = vmul.f32 %v1780, %v1709
        %v1806 = vmul.f32 %v1785, %v1710
        %v1807 = vmul.f32 %v1790, %v1711
        %s1808 = scalar_lea.vmem %s319, 128 [#allocation2]
        %1809 = vst [vmem:[%s1808] sm:$0xff] %v1792
        %1810 = vst [vmem:[%s1808 + $0x8] sm:$0xff] %v1793
        %1811 = vst [vmem:[%s1808 + $0x10] sm:$0xff] %v1794
        %1812 = vst [vmem:[%s1808 + $0x18] sm:$0xff] %v1795
        %1813 = vst [vmem:[%s1808 + $0x20] sm:$0xff] %v1796
        %1814 = vst [vmem:[%s1808 + $0x28] sm:$0xff] %v1797
        %1815 = vst [vmem:[%s1808 + $0x30] sm:$0xff] %v1798
        %1816 = vst [vmem:[%s1808 + $0x38] sm:$0xff] %v1799
        %1817 = vst [vmem:[%s1808 + $0x40] sm:$0xff] %v1800
        %1818 = vst [vmem:[%s1808 + $0x48] sm:$0xff] %v1801
        %1819 = vst [vmem:[%s1808 + $0x50] sm:$0xff] %v1802
        %1820 = vst [vmem:[%s1808 + $0x58] sm:$0xff] %v1803
        %1821 = vst [vmem:[%s1808 + $0x60] sm:$0xff] %v1804
        %1822 = vst [vmem:[%s1808 + $0x68] sm:$0xff] %v1805
        %1823 = vst [vmem:[%s1808 + $0x70] sm:$0xff] %v1806
        %1824 = vst [vmem:[%s1808 + $0x78] sm:$0xff] %v1807
        %v1825 = vld [vmem:[%s6] sm:$0xff]
        %v1826 = vld [vmem:[%s6 + $0x8] sm:$0xff]
        %v1827 = vld [vmem:[%s6 + $0x10] sm:$0xff]
        %v1828 = vld [vmem:[%s6 + $0x18] sm:$0xff]
        %v1829 = vld [vmem:[%s6 + $0x20] sm:$0xff]
        %v1830 = vld [vmem:[%s6 + $0x28] sm:$0xff]
        %v1831 = vld [vmem:[%s6 + $0x30] sm:$0xff]
        %v1832 = vld [vmem:[%s6 + $0x38] sm:$0xff]
        %v1833 = vld [vmem:[%s6 + $0x40] sm:$0xff]
        %v1834 = vld [vmem:[%s6 + $0x48] sm:$0xff]
        %v1835 = vld [vmem:[%s6 + $0x50] sm:$0xff]
        %v1836 = vld [vmem:[%s6 + $0x58] sm:$0xff]
        %v1837 = vld [vmem:[%s6 + $0x60] sm:$0xff]
        %v1838 = vld [vmem:[%s6 + $0x68] sm:$0xff]
        %v1839 = vld [vmem:[%s6 + $0x70] sm:$0xff]
        %v1840 = vld [vmem:[%s6 + $0x78] sm:$0xff]
        %v1841 = vmul.f32 %v1825, %v1715
        %v1842 = vmul.f32 %v1826, %v1720
        %v1843 = vmul.f32 %v1827, %v1725
        %v1844 = vmul.f32 %v1828, %v1730
        %v1845 = vmul.f32 %v1829, %v1735
        %v1846 = vmul.f32 %v1830, %v1740
        %v1847 = vmul.f32 %v1831, %v1745
        %v1848 = vmul.f32 %v1832, %v1750
        %v1849 = vmul.f32 %v1833, %v1755
        %v1850 = vmul.f32 %v1834, %v1760
        %v1851 = vmul.f32 %v1835, %v1765
        %v1852 = vmul.f32 %v1836, %v1770
        %v1853 = vmul.f32 %v1837, %v1775
        %v1854 = vmul.f32 %v1838, %v1780
        %v1855 = vmul.f32 %v1839, %v1785
        %v1856 = vmul.f32 %v1840, %v1790
        %v1857 = vadd.f32 %v1841, %v1842
        %v1858 = vadd.f32 %v1857, %v1843
        %v1859 = vadd.f32 %v1858, %v1844
        %v1860 = vadd.f32 %v1859, %v1845
        %v1861 = vadd.f32 %v1860, %v1846
        %v1862 = vadd.f32 %v1861, %v1847
        %v1863 = vadd.f32 %v1862, %v1848
        %v1864 = vadd.f32 %v1863, %v1849
        %v1865 = vadd.f32 %v1864, %v1850
        %v1866 = vadd.f32 %v1865, %v1851
        %v1867 = vadd.f32 %v1866, %v1852
        %v1868 = vadd.f32 %v1867, %v1853
        %v1869 = vadd.f32 %v1868, %v1854
        %v1870 = vadd.f32 %v1869, %v1855
        %v1871 = vadd.f32 %v1870, %v1856
        %v1872 = vrot.slane %v1871, 4
        %v1873 = vadd.f32 %v1871, %v1872
        %v1874 = vrot.slane %v1873, 2
        %v1875 = vadd.f32 %v1873, %v1874
        %v1876 = vrot.slane %v1875, 1
        %v1877 = vadd.f32 %v1875, %v1876
        %s1878 = scalar_lea.vmem %s326, 1 [#allocation4]
        %1879 = vst [vmem:[%s1878] sm:$0x1] %v1877
        %s1880 = sand.u32 %s191, 1
        %s1881 = scalar_lea.sflag [#allocation3], %s1880
        %s1882 = sand.u32 %s191, 1
        %s1883 = smul.addr %s1882, 256
        %s1884 = scalar_lea.vmem [#allocation2], %s1883
        %s1885 = sand.u32 %s217, 1
        %s1886 = scalar_lea.sflag [#allocation5], %s1885
        %s1887 = sand.u32 %s217, 1
        %s1888 = smul.addr %s1887, 2
        %s1889 = scalar_lea.vmem [#allocation4], %s1888
        // Predicated region
        $region49: #{tpu_custom_call.1} parent=47 // pred_check
          %p1890 = pneg %p201
        $region50: #{tpu_custom_call.1} parent=47 // pred_check_branch
          %1892 = sbr.rel (%p1890) target = $region52
        $region51: #{tpu_custom_call.1} parent=47 // pred_region
          %s1893 = smul.u32 2, %s26
          %s1895 = ssub.s32 4096, 4096
          %1896 = vsyncadd %s1881, %s1895
          %s1897 = smul.addr %s1893, 16
          %s1898 = smul.addr %s1897, 128
          %s1899 = scalar_lea.hbm %s7, %s1898
          %s1900 = sshll.u32 %s1884, 4
          %s1901 = int_to_ptr.vmem [resolvable:$true] %s1900
          %1906 = dma.vmem_to_hbm [thread:$0]  %s1901, 4096, %s1899, %s1881, 128, 128, 8
        $region52: #{tpu_custom_call.1} parent=47 // pred_fallthru
          _
        // Predicated region
        $region53: #{tpu_custom_call.1} parent=47 // pred_check
          %p1907 = pneg %p227
        $region54: #{tpu_custom_call.1} parent=47 // pred_check_branch
          %1909 = sbr.rel (%p1907) target = $region56
        $region55: #{tpu_custom_call.1} parent=47 // pred_region
          %s1910 = smul.u32 2, %s26
          %s1912 = ssub.s32 32, 32
          %1913 = vsyncadd %s1886, %s1912
          %s1914 = smul.addr %s1910, 16
          %s1915 = scalar_lea.hbm %s8, %s1914
          %s1916 = sshll.u32 %s1889, 4
          %s1917 = int_to_ptr.vmem [resolvable:$true] %s1916
          %1922 = dma.vmem_to_hbm [thread:$0]  %s1917, 32, %s1915, %s1886, 16, 16, 1
        $region56: #{tpu_custom_call.1} parent=47 // pred_fallthru
          _
      $region48: #{tpu_custom_call.1} parent=5 // pred_fallthru
        _
      %p1923 = scmp.le.s32.totalorder 2, %s21
      // Predicated region
      $region57: #{tpu_custom_call.1} parent=5 // pred_check
        %p1924 = pneg %p1923
      $region58: #{tpu_custom_call.1} parent=5 // pred_check_branch
        %1926 = sbr.rel (%p1924) target = $region60
      $region59: #{tpu_custom_call.1} parent=5 // pred_region
        %s1927 = ssub.s32 %s21, 2
        // Predicated region
        $region61: #{tpu_custom_call.1} parent=59 // pred_check
          %p1928 = pneg %p207
        $region62: #{tpu_custom_call.1} parent=59 // pred_check_branch
          %1930 = sbr.rel (%p1928) target = $region64
        $region63: #{tpu_custom_call.1} parent=59 // pred_region
          %s1931 = sand.u32 %s192, 1
          %s1932 = scalar_lea.sflag [#allocation3], %s1931
          %s1933 = sand.u32 %s192, 1
          %s1934 = smul.addr %s1933, 256
          %s1935 = scalar_lea.vmem [#allocation2], %s1934
          %1936 = dma.done %s1932, 4096
        $region64: #{tpu_custom_call.1} parent=59 // pred_fallthru
          _
        // Predicated region
        $region65: #{tpu_custom_call.1} parent=59 // pred_check
          %p1937 = pneg %p233
        $region66: #{tpu_custom_call.1} parent=59 // pred_check_branch
          %1939 = sbr.rel (%p1937) target = $region68
        $region67: #{tpu_custom_call.1} parent=59 // pred_region
          %s1940 = sand.u32 %s218, 1
          %s1941 = scalar_lea.sflag [#allocation5], %s1940
          %s1942 = sand.u32 %s218, 1
          %s1943 = smul.addr %s1942, 2
          %s1944 = scalar_lea.vmem [#allocation4], %s1943
          %1945 = dma.done %s1941, 32
        $region68: #{tpu_custom_call.1} parent=59 // pred_fallthru
          _
      $region60: #{tpu_custom_call.1} parent=5 // pred_fallthru
        _
    $region6: #{tpu_custom_call.1} parent=1 // loop_footer
      %s25 = sadd.s32 1, %s21
    $region7: #{tpu_custom_call.1} parent=1 // loop_footer_branch
      %20 = sbr.rel target = $region3
    $region8: #{tpu_custom_call.1} parent=1 // loop_exit
      _
    %1946 = vsyncpa [#allocation3], 1
    %s1947 = scalar_lea.sflag [#allocation3], 1
    %1948 = vsyncpa %s1947, 1
    %1949 = vsyncpa [#allocation5], 1
    %s1950 = scalar_lea.sflag [#allocation5], 1
    %1951 = vsyncpa %s1950, 1

</llo_original>
